<compile_context>
chip_gen: v6e
topology: v6e:2x2x1
jax: 0.10.0
libtpu: 0.0.40
codegen_flags: <defaults>
</compile_context>

<pallas_src>
import functools

import jax
import jax.numpy as jnp
from jax.experimental import pallas as pl
from jax.experimental.pallas import tpu as pltpu


def _attention_kernel(q_ref, k_ref, v_ref, wq_ref, wk_ref, wv_ref,
                      attn_ref, ctx_ref, *, n_head, d_k, d_v, scale):
    # One batch element per grid step.
    q2 = q_ref[0]          # (Lq, d_model)
    k2 = k_ref[0]          # (Lk, d_model)
    v2 = v_ref[0]          # (Lk, d_model)

    # Projections: native-dtype operands straight from VMEM, f32 MXU accumulation
    # (no .astype upcasts of the resident weights -> no repeated VALU casts).
    Q = jnp.dot(q2, wq_ref[...], preferred_element_type=jnp.float32)   # (Lq, H*d_k)
    K = jnp.dot(k2, wk_ref[...], preferred_element_type=jnp.float32)   # (Lk, H*d_k)
    V = jnp.dot(v2, wv_ref[...], preferred_element_type=jnp.float32)   # (Lk, H*d_v)

    for h in range(n_head):                       # static unroll (n_head small)
        Qh = Q[:, h * d_k:(h + 1) * d_k]          # matches reshape(...,H,d_k)[:,:,h,:]
        Kh = K[:, h * d_k:(h + 1) * d_k]
        Vh = V[:, h * d_v:(h + 1) * d_v]

        # scores (Lq, Lk) = Qh @ Kh^T  (contract last dims, no explicit transpose)
        s = jax.lax.dot_general(Qh, Kh, (((1,), (1,)), ((), ())),
                                preferred_element_type=jnp.float32)
        # TODO(synk): optional attention mask (masked_fill(mask==0, -1e9)) not implemented.
        s = s * scale

        # softmax over keys, f32
        m = jnp.max(s, axis=-1, keepdims=True)
        p = jnp.exp(s - m)
        attn = p / jnp.sum(p, axis=-1, keepdims=True)
        # TODO(synk): nn.Dropout on attention probs is identity (eval mode).

        ctx = jnp.dot(attn, Vh, preferred_element_type=jnp.float32)    # (Lq, d_v)

        attn_ref[0, h, :, :] = attn.astype(attn_ref.dtype)
        ctx_ref[0, h, :, :] = ctx.astype(ctx_ref.dtype)


def _out_proj_layernorm_kernel(flat_ref, res_ref, wo_ref, g_ref, b_ref, o_ref, *, eps):
    # Row-tiled: flat (TM, H*d_v), residual (TM, d_model), Wo resident whole.
    y = jnp.dot(flat_ref[...], wo_ref[...], preferred_element_type=jnp.float32)
    # TODO(synk): nn.Dropout on the projected output is identity (eval mode).
    y = y + res_ref[...].astype(jnp.float32)                     # residual add

    # LayerNorm over last dim (biased variance, eps inside sqrt) — stats in f32.
    mean = jnp.mean(y, axis=-1, keepdims=True)
    cent = y - mean
    var = jnp.mean(cent * cent, axis=-1, keepdims=True)
    out = cent * jax.lax.rsqrt(var + eps) * g_ref[...] + b_ref[...]
    o_ref[...] = out.astype(o_ref.dtype)


def multi_head_attention(q, k, v, wq, wk, wv, wo, gamma, beta, *,
                         n_head, d_k, d_v, eps=1e-6, tile_m=None):
    """q,k,v: (B, L, d_model). Weights stored pre-transposed (in, out). Returns (out, attn)."""
    B, Lq, d_model = q.shape
    Lk = k.shape[1]
    assert v.shape[1] == Lk, "key/value lengths must match"
    scale = 1.0 / (d_k ** 0.5)
    itemsize = q.dtype.itemsize

    # ---------------- Kernel A: attention (grid over batch) -----------------
    flops_a = B * (2 * Lq * d_model * n_head * d_k
                   + 2 * Lk * d_model * n_head * d_k
                   + 2 * Lk * d_model * n_head * d_v
                   + n_head * (2 * Lq * Lk * d_k + 2 * Lq * Lk * d_v))
    bytes_a = ((q.size + k.size + v.size) * itemsize
               + (wq.size + wk.size + wv.size) * wq.dtype.itemsize
               + B * n_head * Lq * Lk * itemsize
               + B * n_head * Lq * d_v * itemsize)

    attn, ctx = pl.pallas_call(
        functools.partial(_attention_kernel,
                          n_head=n_head, d_k=d_k, d_v=d_v, scale=scale),
        out_shape=(jax.ShapeDtypeStruct((B, n_head, Lq, Lk), q.dtype),
                   jax.ShapeDtypeStruct((B, n_head, Lq, d_v), q.dtype)),
        grid_spec=pltpu.PrefetchScalarGridSpec(
            num_scalar_prefetch=0,
            grid=(B,),
            in_specs=[
                pl.BlockSpec((1, Lq, d_model), lambda b: (b, 0, 0)),       # q
                pl.BlockSpec((1, Lk, d_model), lambda b: (b, 0, 0)),       # k
                pl.BlockSpec((1, Lk, d_model), lambda b: (b, 0, 0)),       # v
                pl.BlockSpec((d_model, n_head * d_k), lambda b: (0, 0)),   # Wq (whole)
                pl.BlockSpec((d_model, n_head * d_k), lambda b: (0, 0)),   # Wk (whole)
                pl.BlockSpec((d_model, n_head * d_v), lambda b: (0, 0)),   # Wv (whole)
            ],
            out_specs=[
                pl.BlockSpec((1, n_head, Lq, Lk), lambda b: (b, 0, 0, 0)),  # attn
                pl.BlockSpec((1, n_head, Lq, d_v), lambda b: (b, 0, 0, 0)), # ctx
            ],
        ),
        compiler_params=pltpu.CompilerParams(
            dimension_semantics=("parallel",),
            vmem_limit_bytes=64 * 1024 * 1024),
        cost_estimate=pl.CostEstimate(flops=flops_a,
                                      transcendentals=B * n_head * Lq * Lk,
                                      bytes_accessed=bytes_a),
    )(q, k, v, wq, wk, wv)

    # Faithful to the PyTorch module: qkv.view(B, Lq, n_head*d_v) is a raw reshape
    # of the contiguous (b, n_head, Lq, d_v) tensor.  Done here as cheap XLA metadata,
    # keeping the Pallas kernels free of cross-tile reshapes.
    flat = ctx.reshape(B, Lq, n_head * d_v)

    # ------------- Kernel B: fc_out + residual + LayerNorm (row tiled) -------------
    n_rows = B * Lq
    flat2d = flat.reshape(n_rows, n_head * d_v)
    res2d = q.reshape(n_rows, d_model)
    # hoist affine-param casts out of the kernel (tiny vectors, done once here)
    g2d = gamma.astype(jnp.float32).reshape(1, d_model)
    b2d = beta.astype(jnp.float32).reshape(1, d_model)

    if tile_m is None:
        tile_m = next((t for t in (512, 256, 128, 64, 32, 16, 8) if n_rows % t == 0),
                      n_rows)
    assert n_rows % tile_m == 0, "row count must divide the row tile"

    flops_b = 2 * n_rows * (n_head * d_v) * d_model + 10 * n_rows * d_model
    bytes_b = ((flat2d.size + res2d.size) * itemsize
               + wo.size * wo.dtype.itemsize
               + n_rows * d_model * itemsize
               + 2 * d_model * 4)

    out2d = pl.pallas_call(
        functools.partial(_out_proj_layernorm_kernel, eps=eps),
        out_shape=jax.ShapeDtypeStruct((n_rows, d_model), q.dtype),
        grid_spec=pltpu.PrefetchScalarGridSpec(
            num_scalar_prefetch=0,
            grid=(n_rows // tile_m,),
            in_specs=[
                pl.BlockSpec((tile_m, n_head * d_v), lambda i: (i, 0)),    # ctx rows
                pl.BlockSpec((tile_m, d_model), lambda i: (i, 0)),         # residual rows
                pl.BlockSpec((n_head * d_v, d_model), lambda i: (0, 0)),   # Wo (whole)
                pl.BlockSpec((1, d_model), lambda i: (0, 0)),              # gamma
                pl.BlockSpec((1, d_model), lambda i: (0, 0)),              # beta
            ],
            out_specs=pl.BlockSpec((tile_m, d_model), lambda i: (i, 0)),
        ),
        compiler_params=pltpu.CompilerParams(
            dimension_semantics=("parallel",),
            vmem_limit_bytes=64 * 1024 * 1024),
        cost_estimate=pl.CostEstimate(flops=flops_b, transcendentals=n_rows,
                                      bytes_accessed=bytes_b),
    )(flat2d, res2d, wo, g2d, b2d)

    return out2d.reshape(B, Lq, d_model), attn


def reference(q, k, v, wq, wk, wv, wo, gamma, beta, *, n_head, d_k, d_v, eps=1e-6):
    """Pure-JAX replica of the PyTorch forward (including the raw .view reshape)."""
    B, Lq, d_model = q.shape
    Lk = k.shape[1]
    residual = q
    Q = (q @ wq).reshape(B, Lq, n_head, d_k)
    K = (k @ wk).reshape(B, Lk, n_head, d_k)
    V = (v @ wv).reshape(B, Lk, n_head, d_v)
    s = jnp.einsum('bqnd,bknd->bnqk', Q, K) / (d_k ** 0.5)
    attn = jax.nn.softmax(s, axis=-1)
    ctx = jnp.einsum('bnqk,bknd->bnqd', attn, V)          # (B, H, Lq, d_v)
    flat = ctx.reshape(B, Lq, n_head * d_v)               # matches torch .view
    y = flat @ wo + residual
    mean = y.mean(-1, keepdims=True)
    var = ((y - mean) ** 2).mean(-1, keepdims=True)
    out = (y - mean) / jnp.sqrt(var + eps) * gamma + beta
    return out, attn


if __name__ == "__main__":
    # Small shapes consistent with the module: batch=2, seq=8, d_model=32, n_head=4, d_k=d_v=8
    batch, seq, d_model = 2, 8, 32
    n_head, d_k, d_v = 4, 8, 8

    key = jax.random.PRNGKey(0)
    kq, kk, kv, k1, k2, k3, k4, k5, k6 = jax.random.split(key, 9)

    q = jax.random.normal(kq, (batch, seq, d_model), dtype=jnp.float32)
    k = jax.random.normal(kk, (batch, seq, d_model), dtype=jnp.float32)
    v = jax.random.normal(kv, (batch, seq, d_model), dtype=jnp.float32)

    # Linear weights stored pre-transposed (in_features, out_features); bias=False as in the module.
    wq = jax.random.normal(k1, (d_model, n_head * d_k), jnp.float32) * (d_model ** -0.5)
    wk = jax.random.normal(k2, (d_model, n_head * d_k), jnp.float32) * (d_model ** -0.5)
    wv = jax.random.normal(k3, (d_model, n_head * d_v), jnp.float32) * (d_model ** -0.5)
    wo = jax.random.normal(k4, (n_head * d_v, d_model), jnp.float32) * ((n_head * d_v) ** -0.5)
    gamma = jnp.ones((d_model,), jnp.float32) + 0.1 * jax.random.normal(k5, (d_model,), jnp.float32)
    beta = 0.1 * jax.random.normal(k6, (d_model,), jnp.float32)

    out, attn = multi_head_attention(q, k, v, wq, wk, wv, wo, gamma, beta,
                                     n_head=n_head, d_k=d_k, d_v=d_v)
    jax.block_until_ready((out, attn))

    ref_out, ref_attn = reference(q, k, v, wq, wk, wv, wo, gamma, beta,
                                  n_head=n_head, d_k=d_k, d_v=d_v)
    assert out.shape == (batch, seq, d_model)
    assert attn.shape == (batch, n_head, seq, seq)
    assert jnp.allclose(attn, ref_attn, atol=1e-5, rtol=1e-5), "attention mismatch vs. reference"
    assert jnp.allclose(out, ref_out, atol=1e-4, rtol=1e-4), "output mismatch vs. reference"

    print("KERNEL_OK")
</pallas_src>

<mosaic_0001>
module attributes {stable_mosaic.version = 11 : i64} {
  func.func @_attention_kernel(%arg0: i32, %arg1: memref<1x8x32xf32, #tpu.memory_space<vmem>>, %arg2: memref<1x8x32xf32, #tpu.memory_space<vmem>>, %arg3: memref<1x8x32xf32, #tpu.memory_space<vmem>>, %arg4: memref<32x32xf32, #tpu.memory_space<vmem>>, %arg5: memref<32x32xf32, #tpu.memory_space<vmem>>, %arg6: memref<32x32xf32, #tpu.memory_space<vmem>>, %arg7: memref<1x4x8x8xf32, #tpu.memory_space<vmem>>, %arg8: memref<1x4x8x8xf32, #tpu.memory_space<vmem>>) attributes {dimension_semantics = [#tpu.dimension_semantics<parallel>], iteration_bounds = array<i64: 2>, scalar_prefetch = 0 : i64, scratch_operands = 0 : i64, tpu.core_type = #tpu.core_type<tc>, window_params = [{transform_indices = @transform_0, window_bounds = array<i64: 1, 8, 32>}, {transform_indices = @transform_1, window_bounds = array<i64: 1, 8, 32>}, {transform_indices = @transform_2, window_bounds = array<i64: 1, 8, 32>}, {pipeline_mode = #tpu.pipeline_mode<synchronous>, transform_indices = @transform_3, window_bounds = array<i64: 32, 32>}, {pipeline_mode = #tpu.pipeline_mode<synchronous>, transform_indices = @transform_4, window_bounds = array<i64: 32, 32>}, {pipeline_mode = #tpu.pipeline_mode<synchronous>, transform_indices = @transform_5, window_bounds = array<i64: 32, 32>}, {transform_indices = @transform_6, window_bounds = array<i64: 1, 4, 8, 8>}, {transform_indices = @transform_7, window_bounds = array<i64: 1, 4, 8, 8>}]} {
    %c0 = arith.constant 0 : index
    %c0_0 = arith.constant 0 : index
    %c0_1 = arith.constant 0 : index
    %0 = vector.load %arg1[%c0, %c0_0, %c0_1] : memref<1x8x32xf32, #tpu.memory_space<vmem>>, vector<1x8x32xf32>
    %1 = vector.shape_cast %0 : vector<1x8x32xf32> to vector<8x32xf32>
    %c0_2 = arith.constant 0 : index
    %c0_3 = arith.constant 0 : index
    %c0_4 = arith.constant 0 : index
    %2 = vector.load %arg2[%c0_2, %c0_3, %c0_4] : memref<1x8x32xf32, #tpu.memory_space<vmem>>, vector<1x8x32xf32>
    %3 = vector.shape_cast %2 : vector<1x8x32xf32> to vector<8x32xf32>
    %c0_5 = arith.constant 0 : index
    %c0_6 = arith.constant 0 : index
    %c0_7 = arith.constant 0 : index
    %4 = vector.load %arg3[%c0_5, %c0_6, %c0_7] : memref<1x8x32xf32, #tpu.memory_space<vmem>>, vector<1x8x32xf32>
    %5 = vector.shape_cast %4 : vector<1x8x32xf32> to vector<8x32xf32>
    %c0_8 = arith.constant 0 : index
    %c0_9 = arith.constant 0 : index
    %6 = vector.load %arg4[%c0_8, %c0_9] : memref<32x32xf32, #tpu.memory_space<vmem>>, vector<32x32xf32>
    %cst = arith.constant dense<0.000000e+00> : vector<8x32xf32>
    %7 = tpu.matmul %1, %6, %cst {dimension_numbers = #tpu.dot_dimension_numbers<[1], [0], [0], [1], [0, 0, 1, 1], [], []>} : vector<8x32xf32>, vector<32x32xf32>, vector<8x32xf32> -> vector<8x32xf32>
    %c0_10 = arith.constant 0 : index
    %c0_11 = arith.constant 0 : index
    %8 = vector.load %arg5[%c0_10, %c0_11] : memref<32x32xf32, #tpu.memory_space<vmem>>, vector<32x32xf32>
    %cst_12 = arith.constant dense<0.000000e+00> : vector<8x32xf32>
    %9 = tpu.matmul %3, %8, %cst_12 {dimension_numbers = #tpu.dot_dimension_numbers<[1], [0], [0], [1], [0, 0, 1, 1], [], []>} : vector<8x32xf32>, vector<32x32xf32>, vector<8x32xf32> -> vector<8x32xf32>
    %c0_13 = arith.constant 0 : index
    %c0_14 = arith.constant 0 : index
    %10 = vector.load %arg6[%c0_13, %c0_14] : memref<32x32xf32, #tpu.memory_space<vmem>>, vector<32x32xf32>
    %cst_15 = arith.constant dense<0.000000e+00> : vector<8x32xf32>
    %11 = tpu.matmul %5, %10, %cst_15 {dimension_numbers = #tpu.dot_dimension_numbers<[1], [0], [0], [1], [0, 0, 1, 1], [], []>} : vector<8x32xf32>, vector<32x32xf32>, vector<8x32xf32> -> vector<8x32xf32>
    %12 = vector.extract_strided_slice %7 {offsets = [0, 0], sizes = [8, 8], strides = [1, 1]} : vector<8x32xf32> to vector<8x8xf32>
    %13 = vector.extract_strided_slice %9 {offsets = [0, 0], sizes = [8, 8], strides = [1, 1]} : vector<8x32xf32> to vector<8x8xf32>
    %14 = vector.extract_strided_slice %11 {offsets = [0, 0], sizes = [8, 8], strides = [1, 1]} : vector<8x32xf32> to vector<8x8xf32>
    %cst_16 = arith.constant dense<0.000000e+00> : vector<8x8xf32>
    %15 = tpu.matmul %12, %13, %cst_16 {dimension_numbers = #tpu.dot_dimension_numbers<[1], [1], [0], [0], [0, 0, 1, 0], [], []>} : vector<8x8xf32>, vector<8x8xf32>, vector<8x8xf32> -> vector<8x8xf32>
    %cst_17 = arith.constant 0.353553385 : f32
    %16 = vector.broadcast %cst_17 : f32 to vector<8x8xf32>
    %17 = arith.mulf %15, %16 : vector<8x8xf32>
    %cst_18 = arith.constant dense<0xFF800000> : vector<8xf32>
    %18 = vector.multi_reduction <maximumf>, %17, %cst_18 [1] : vector<8x8xf32> to vector<8xf32>
    %19 = vector.shape_cast %18 : vector<8xf32> to vector<8x1xf32>
    %20 = vector.broadcast %19 : vector<8x1xf32> to vector<8x8xf32>
    %21 = arith.subf %17, %20 : vector<8x8xf32>
    %22 = math.exp %21 : vector<8x8xf32>
    %cst_19 = arith.constant dense<0.000000e+00> : vector<8xf32>
    %23 = vector.multi_reduction <add>, %22, %cst_19 [1] : vector<8x8xf32> to vector<8xf32>
    %24 = vector.shape_cast %23 : vector<8xf32> to vector<8x1xf32>
    %25 = vector.broadcast %24 : vector<8x1xf32> to vector<8x8xf32>
    %26 = arith.divf %22, %25 : vector<8x8xf32>
    %cst_20 = arith.constant dense<0.000000e+00> : vector<8x8xf32>
    %27 = tpu.matmul %26, %14, %cst_20 {dimension_numbers = #tpu.dot_dimension_numbers<[1], [0], [0], [1], [0, 0, 1, 1], [], []>} : vector<8x8xf32>, vector<8x8xf32>, vector<8x8xf32> -> vector<8x8xf32>
    %c0_21 = arith.constant 0 : index
    %c0_22 = arith.constant 0 : index
    %c0_23 = arith.constant 0 : index
    %c0_24 = arith.constant 0 : index
    %28 = vector.load %arg7[%c0_21, %c0_22, %c0_23, %c0_24] : memref<1x4x8x8xf32, #tpu.memory_space<vmem>>, vector<1x1x8x8xf32>
    %29 = vector.shape_cast %28 : vector<1x1x8x8xf32> to vector<8x8xf32>
    %30 = vector.shape_cast %26 : vector<8x8xf32> to vector<1x1x8x8xf32>
    tpu.vector_store %arg7[%c0_21, %c0_22, %c0_23, %c0_24], %30 {strides = array<i32>} : memref<1x4x8x8xf32, #tpu.memory_space<vmem>>, vector<1x1x8x8xf32>,
    %c0_25 = arith.constant 0 : index
    %c0_26 = arith.constant 0 : index
    %c0_27 = arith.constant 0 : index
    %c0_28 = arith.constant 0 : index
    %31 = vector.load %arg8[%c0_25, %c0_26, %c0_27, %c0_28] : memref<1x4x8x8xf32, #tpu.memory_space<vmem>>, vector<1x1x8x8xf32>
    %32 = vector.shape_cast %31 : vector<1x1x8x8xf32> to vector<8x8xf32>
    %33 = vector.shape_cast %27 : vector<8x8xf32> to vector<1x1x8x8xf32>
    tpu.vector_store %arg8[%c0_25, %c0_26, %c0_27, %c0_28], %33 {strides = array<i32>} : memref<1x4x8x8xf32, #tpu.memory_space<vmem>>, vector<1x1x8x8xf32>,
    %34 = vector.extract_strided_slice %7 {offsets = [0, 8], sizes = [8, 8], strides = [1, 1]} : vector<8x32xf32> to vector<8x8xf32>
    %35 = vector.extract_strided_slice %9 {offsets = [0, 8], sizes = [8, 8], strides = [1, 1]} : vector<8x32xf32> to vector<8x8xf32>
    %36 = vector.extract_strided_slice %11 {offsets = [0, 8], sizes = [8, 8], strides = [1, 1]} : vector<8x32xf32> to vector<8x8xf32>
    %cst_29 = arith.constant dense<0.000000e+00> : vector<8x8xf32>
    %37 = tpu.matmul %34, %35, %cst_29 {dimension_numbers = #tpu.dot_dimension_numbers<[1], [1], [0], [0], [0, 0, 1, 0], [], []>} : vector<8x8xf32>, vector<8x8xf32>, vector<8x8xf32> -> vector<8x8xf32>
    %cst_30 = arith.constant 0.353553385 : f32
    %38 = vector.broadcast %cst_30 : f32 to vector<8x8xf32>
    %39 = arith.mulf %37, %38 : vector<8x8xf32>
    %cst_31 = arith.constant dense<0xFF800000> : vector<8xf32>
    %40 = vector.multi_reduction <maximumf>, %39, %cst_31 [1] : vector<8x8xf32> to vector<8xf32>
    %41 = vector.shape_cast %40 : vector<8xf32> to vector<8x1xf32>
    %42 = vector.broadcast %41 : vector<8x1xf32> to vector<8x8xf32>
    %43 = arith.subf %39, %42 : vector<8x8xf32>
    %44 = math.exp %43 : vector<8x8xf32>
    %cst_32 = arith.constant dense<0.000000e+00> : vector<8xf32>
    %45 = vector.multi_reduction <add>, %44, %cst_32 [1] : vector<8x8xf32> to vector<8xf32>
    %46 = vector.shape_cast %45 : vector<8xf32> to vector<8x1xf32>
    %47 = vector.broadcast %46 : vector<8x1xf32> to vector<8x8xf32>
    %48 = arith.divf %44, %47 : vector<8x8xf32>
    %cst_33 = arith.constant dense<0.000000e+00> : vector<8x8xf32>
    %49 = tpu.matmul %48, %36, %cst_33 {dimension_numbers = #tpu.dot_dimension_numbers<[1], [0], [0], [1], [0, 0, 1, 1], [], []>} : vector<8x8xf32>, vector<8x8xf32>, vector<8x8xf32> -> vector<8x8xf32>
    %c0_34 = arith.constant 0 : index
    %c1 = arith.constant 1 : index
    %c0_35 = arith.constant 0 : index
    %c0_36 = arith.constant 0 : index
    %50 = vector.load %arg7[%c0_34, %c1, %c0_35, %c0_36] : memref<1x4x8x8xf32, #tpu.memory_space<vmem>>, vector<1x1x8x8xf32>
    %51 = vector.shape_cast %50 : vector<1x1x8x8xf32> to vector<8x8xf32>
    %52 = vector.shape_cast %48 : vector<8x8xf32> to vector<1x1x8x8xf32>
    tpu.vector_store %arg7[%c0_34, %c1, %c0_35, %c0_36], %52 {strides = array<i32>} : memref<1x4x8x8xf32, #tpu.memory_space<vmem>>, vector<1x1x8x8xf32>,
    %c0_37 = arith.constant 0 : index
    %c1_38 = arith.constant 1 : index
    %c0_39 = arith.constant 0 : index
    %c0_40 = arith.constant 0 : index
    %53 = vector.load %arg8[%c0_37, %c1_38, %c0_39, %c0_40] : memref<1x4x8x8xf32, #tpu.memory_space<vmem>>, vector<1x1x8x8xf32>
    %54 = vector.shape_cast %53 : vector<1x1x8x8xf32> to vector<8x8xf32>
    %55 = vector.shape_cast %49 : vector<8x8xf32> to vector<1x1x8x8xf32>
    tpu.vector_store %arg8[%c0_37, %c1_38, %c0_39, %c0_40], %55 {strides = array<i32>} : memref<1x4x8x8xf32, #tpu.memory_space<vmem>>, vector<1x1x8x8xf32>,
    %56 = vector.extract_strided_slice %7 {offsets = [0, 16], sizes = [8, 8], strides = [1, 1]} : vector<8x32xf32> to vector<8x8xf32>
    %57 = vector.extract_strided_slice %9 {offsets = [0, 16], sizes = [8, 8], strides = [1, 1]} : vector<8x32xf32> to vector<8x8xf32>
    %58 = vector.extract_strided_slice %11 {offsets = [0, 16], sizes = [8, 8], strides = [1, 1]} : vector<8x32xf32> to vector<8x8xf32>
    %cst_41 = arith.constant dense<0.000000e+00> : vector<8x8xf32>
    %59 = tpu.matmul %56, %57, %cst_41 {dimension_numbers = #tpu.dot_dimension_numbers<[1], [1], [0], [0], [0, 0, 1, 0], [], []>} : vector<8x8xf32>, vector<8x8xf32>, vector<8x8xf32> -> vector<8x8xf32>
    %cst_42 = arith.constant 0.353553385 : f32
    %60 = vector.broadcast %cst_42 : f32 to vector<8x8xf32>
    %61 = arith.mulf %59, %60 : vector<8x8xf32>
    %cst_43 = arith.constant dense<0xFF800000> : vector<8xf32>
    %62 = vector.multi_reduction <maximumf>, %61, %cst_43 [1] : vector<8x8xf32> to vector<8xf32>
    %63 = vector.shape_cast %62 : vector<8xf32> to vector<8x1xf32>
    %64 = vector.broadcast %63 : vector<8x1xf32> to vector<8x8xf32>
    %65 = arith.subf %61, %64 : vector<8x8xf32>
    %66 = math.exp %65 : vector<8x8xf32>
    %cst_44 = arith.constant dense<0.000000e+00> : vector<8xf32>
    %67 = vector.multi_reduction <add>, %66, %cst_44 [1] : vector<8x8xf32> to vector<8xf32>
    %68 = vector.shape_cast %67 : vector<8xf32> to vector<8x1xf32>
    %69 = vector.broadcast %68 : vector<8x1xf32> to vector<8x8xf32>
    %70 = arith.divf %66, %69 : vector<8x8xf32>
    %cst_45 = arith.constant dense<0.000000e+00> : vector<8x8xf32>
    %71 = tpu.matmul %70, %58, %cst_45 {dimension_numbers = #tpu.dot_dimension_numbers<[1], [0], [0], [1], [0, 0, 1, 1], [], []>} : vector<8x8xf32>, vector<8x8xf32>, vector<8x8xf32> -> vector<8x8xf32>
    %c0_46 = arith.constant 0 : index
    %c2 = arith.constant 2 : index
    %c0_47 = arith.constant 0 : index
    %c0_48 = arith.constant 0 : index
    %72 = vector.load %arg7[%c0_46, %c2, %c0_47, %c0_48] : memref<1x4x8x8xf32, #tpu.memory_space<vmem>>, vector<1x1x8x8xf32>
    %73 = vector.shape_cast %72 : vector<1x1x8x8xf32> to vector<8x8xf32>
    %74 = vector.shape_cast %70 : vector<8x8xf32> to vector<1x1x8x8xf32>
    tpu.vector_store %arg7[%c0_46, %c2, %c0_47, %c0_48], %74 {strides = array<i32>} : memref<1x4x8x8xf32, #tpu.memory_space<vmem>>, vector<1x1x8x8xf32>,
    %c0_49 = arith.constant 0 : index
    %c2_50 = arith.constant 2 : index
    %c0_51 = arith.constant 0 : index
    %c0_52 = arith.constant 0 : index
    %75 = vector.load %arg8[%c0_49, %c2_50, %c0_51, %c0_52] : memref<1x4x8x8xf32, #tpu.memory_space<vmem>>, vector<1x1x8x8xf32>
    %76 = vector.shape_cast %75 : vector<1x1x8x8xf32> to vector<8x8xf32>
    %77 = vector.shape_cast %71 : vector<8x8xf32> to vector<1x1x8x8xf32>
    tpu.vector_store %arg8[%c0_49, %c2_50, %c0_51, %c0_52], %77 {strides = array<i32>} : memref<1x4x8x8xf32, #tpu.memory_space<vmem>>, vector<1x1x8x8xf32>,
    %78 = vector.extract_strided_slice %7 {offsets = [0, 24], sizes = [8, 8], strides = [1, 1]} : vector<8x32xf32> to vector<8x8xf32>
    %79 = vector.extract_strided_slice %9 {offsets = [0, 24], sizes = [8, 8], strides = [1, 1]} : vector<8x32xf32> to vector<8x8xf32>
    %80 = vector.extract_strided_slice %11 {offsets = [0, 24], sizes = [8, 8], strides = [1, 1]} : vector<8x32xf32> to vector<8x8xf32>
    %cst_53 = arith.constant dense<0.000000e+00> : vector<8x8xf32>
    %81 = tpu.matmul %78, %79, %cst_53 {dimension_numbers = #tpu.dot_dimension_numbers<[1], [1], [0], [0], [0, 0, 1, 0], [], []>} : vector<8x8xf32>, vector<8x8xf32>, vector<8x8xf32> -> vector<8x8xf32>
    %cst_54 = arith.constant 0.353553385 : f32
    %82 = vector.broadcast %cst_54 : f32 to vector<8x8xf32>
    %83 = arith.mulf %81, %82 : vector<8x8xf32>
    %cst_55 = arith.constant dense<0xFF800000> : vector<8xf32>
    %84 = vector.multi_reduction <maximumf>, %83, %cst_55 [1] : vector<8x8xf32> to vector<8xf32>
    %85 = vector.shape_cast %84 : vector<8xf32> to vector<8x1xf32>
    %86 = vector.broadcast %85 : vector<8x1xf32> to vector<8x8xf32>
    %87 = arith.subf %83, %86 : vector<8x8xf32>
    %88 = math.exp %87 : vector<8x8xf32>
    %cst_56 = arith.constant dense<0.000000e+00> : vector<8xf32>
    %89 = vector.multi_reduction <add>, %88, %cst_56 [1] : vector<8x8xf32> to vector<8xf32>
    %90 = vector.shape_cast %89 : vector<8xf32> to vector<8x1xf32>
    %91 = vector.broadcast %90 : vector<8x1xf32> to vector<8x8xf32>
    %92 = arith.divf %88, %91 : vector<8x8xf32>
    %cst_57 = arith.constant dense<0.000000e+00> : vector<8x8xf32>
    %93 = tpu.matmul %92, %80, %cst_57 {dimension_numbers = #tpu.dot_dimension_numbers<[1], [0], [0], [1], [0, 0, 1, 1], [], []>} : vector<8x8xf32>, vector<8x8xf32>, vector<8x8xf32> -> vector<8x8xf32>
    %c0_58 = arith.constant 0 : index
    %c3 = arith.constant 3 : index
    %c0_59 = arith.constant 0 : index
    %c0_60 = arith.constant 0 : index
    %94 = vector.load %arg7[%c0_58, %c3, %c0_59, %c0_60] : memref<1x4x8x8xf32, #tpu.memory_space<vmem>>, vector<1x1x8x8xf32>
    %95 = vector.shape_cast %94 : vector<1x1x8x8xf32> to vector<8x8xf32>
    %96 = vector.shape_cast %92 : vector<8x8xf32> to vector<1x1x8x8xf32>
    tpu.vector_store %arg7[%c0_58, %c3, %c0_59, %c0_60], %96 {strides = array<i32>} : memref<1x4x8x8xf32, #tpu.memory_space<vmem>>, vector<1x1x8x8xf32>,
    %c0_61 = arith.constant 0 : index
    %c3_62 = arith.constant 3 : index
    %c0_63 = arith.constant 0 : index
    %c0_64 = arith.constant 0 : index
    %97 = vector.load %arg8[%c0_61, %c3_62, %c0_63, %c0_64] : memref<1x4x8x8xf32, #tpu.memory_space<vmem>>, vector<1x1x8x8xf32>
    %98 = vector.shape_cast %97 : vector<1x1x8x8xf32> to vector<8x8xf32>
    %99 = vector.shape_cast %93 : vector<8x8xf32> to vector<1x1x8x8xf32>
    tpu.vector_store %arg8[%c0_61, %c3_62, %c0_63, %c0_64], %99 {strides = array<i32>} : memref<1x4x8x8xf32, #tpu.memory_space<vmem>>, vector<1x1x8x8xf32>,
    return
  }
  func.func @transform_0(%arg0: i32) -> (i32, i32, i32) {
    %c0_i32 = arith.constant 0 : i32
    %c0_i32_0 = arith.constant 0 : i32
    %c0_i32_1 = arith.constant 0 : i32
    return %arg0, %c0_i32, %c0_i32_0 : i32, i32, i32
  }
  func.func @transform_1(%arg0: i32) -> (i32, i32, i32) {
    %c0_i32 = arith.constant 0 : i32
    %c0_i32_0 = arith.constant 0 : i32
    %c0_i32_1 = arith.constant 0 : i32
    return %arg0, %c0_i32, %c0_i32_0 : i32, i32, i32
  }
  func.func @transform_2(%arg0: i32) -> (i32, i32, i32) {
    %c0_i32 = arith.constant 0 : i32
    %c0_i32_0 = arith.constant 0 : i32
    %c0_i32_1 = arith.constant 0 : i32
    return %arg0, %c0_i32, %c0_i32_0 : i32, i32, i32
  }
  func.func @transform_3(%arg0: i32) -> (i32, i32) {
    %c0_i32 = arith.constant 0 : i32
    %c0_i32_0 = arith.constant 0 : i32
    %c0_i32_1 = arith.constant 0 : i32
    return %c0_i32, %c0_i32_0 : i32, i32
  }
  func.func @transform_4(%arg0: i32) -> (i32, i32) {
    %c0_i32 = arith.constant 0 : i32
    %c0_i32_0 = arith.constant 0 : i32
    %c0_i32_1 = arith.constant 0 : i32
    return %c0_i32, %c0_i32_0 : i32, i32
  }
  func.func @transform_5(%arg0: i32) -> (i32, i32) {
    %c0_i32 = arith.constant 0 : i32
    %c0_i32_0 = arith.constant 0 : i32
    %c0_i32_1 = arith.constant 0 : i32
    return %c0_i32, %c0_i32_0 : i32, i32
  }
  func.func @transform_6(%arg0: i32) -> (i32, i32, i32, i32) {
    %c0_i32 = arith.constant 0 : i32
    %c0_i32_0 = arith.constant 0 : i32
    %c0_i32_1 = arith.constant 0 : i32
    %c0_i32_2 = arith.constant 0 : i32
    return %arg0, %c0_i32, %c0_i32_0, %c0_i32_1 : i32, i32, i32, i32
  }
  func.func @transform_7(%arg0: i32) -> (i32, i32, i32, i32) {
    %c0_i32 = arith.constant 0 : i32
    %c0_i32_0 = arith.constant 0 : i32
    %c0_i32_1 = arith.constant 0 : i32
    %c0_i32_2 = arith.constant 0 : i32
    return %arg0, %c0_i32, %c0_i32_0, %c0_i32_1 : i32, i32, i32, i32
  }
}

</mosaic_0001>

<llo_original>
// kernel: tpu_custom_call.1
$region0: #{tpu_custom_call.1}
  #allocation0 [shape = 'u32[]', space=smem, size = 0x4, offset = 0x4, fixed_abs, tag = 'smem constant byte address 0x4 - core index']
  #allocation1 [shape = 'u32[144,128]{1,0:T(1,128)}', space=vmem, size = 0x12000, scoped, tag = 'internal scratch']
  %s0 = inlined_call_operand.hbm [shape: f32[2,8,32], index: 0, kind: input, shape index: {}]
  %s1 = inlined_call_operand.hbm [shape: f32[2,8,32], index: 1, kind: input, shape index: {}]
  %s2 = inlined_call_operand.hbm [shape: f32[2,8,32], index: 2, kind: input, shape index: {}]
  %s3 = inlined_call_operand.hbm [shape: f32[32,32], index: 3, kind: input, shape index: {}]
  %s4 = inlined_call_operand.hbm [shape: f32[32,32], index: 4, kind: input, shape index: {}]
  %s5 = inlined_call_operand.hbm [shape: f32[32,32], index: 5, kind: input, shape index: {}]
  %s6 = inlined_call_operand.hbm [shape: f32[2,4,8,8], index: 6, kind: output, shape index: {0}]
  %s7 = inlined_call_operand.hbm [shape: f32[2,4,8,8], index: 7, kind: output, shape index: {1}]
  %8 = xla_tuple %s6, %s7
  %s9 = sld [smem:[#allocation0]]
  $region89: #{tpu_custom_call.1} parent=0
    _
  %s11 = ssub.s32 1, %s9
  %s12 = scalar_select 0, %s11, %s9
  $region1: #{tpu_custom_call.1} parent=0
    #allocation2 [shape = 'u8[8192]{0}', space=vmem, size = 0x2000, scoped, tag = 'input window, operand 0']
    #allocation3 [shape = 's32[2]{0}', space=sflag, size = 0x8, scoped, tag = 'scoped memory for tpu_custom_call.1']
    #allocation4 [shape = 's32[2]{0}', space=sflag, size = 0x8, scoped, tag = 'scoped memory for tpu_custom_call.1']
    #allocation5 [shape = 'u8[8192]{0}', space=vmem, size = 0x2000, scoped, tag = 'input window, operand 1']
    #allocation6 [shape = 's32[2]{0}', space=sflag, size = 0x8, scoped, tag = 'scoped memory for tpu_custom_call.1']
    #allocation7 [shape = 'u8[8192]{0}', space=vmem, size = 0x2000, scoped, tag = 'input window, operand 2']
    #allocation8 [shape = 'u8[16384]{0}', space=vmem, size = 0x4000, scoped, tag = 'input window, operand 3, single buffered']
    #allocation9 [shape = 's32[1]{0}', space=sflag, size = 0x4, scoped, tag = 'scoped memory for tpu_custom_call.1']
    #allocation10 [shape = 'u8[16384]{0}', space=vmem, size = 0x4000, scoped, tag = 'input window, operand 4, single buffered']
    #allocation11 [shape = 'u8[16384]{0}', space=vmem, size = 0x4000, scoped, tag = 'input window, operand 5, single buffered']
    #allocation12 [shape = 's32[1]{0}', space=sflag, size = 0x4, scoped, tag = 'scoped memory for tpu_custom_call.1']
    #allocation13 [shape = 'u8[32768]{0}', space=vmem, size = 0x8000, scoped, tag = 'output window, operand 0']
    #allocation14 [shape = 'u8[32768]{0}', space=vmem, size = 0x8000, scoped, tag = 'output window, operand 1']
    #allocation15 [shape = 's32[2]{0}', space=sflag, size = 0x8, scoped, tag = 'scoped memory for tpu_custom_call.1']
    %13 = vsyncpa [#allocation3], 0
    %s14 = scalar_lea.sflag [#allocation3], 1
    %15 = vsyncpa %s14, 0
    %16 = vsyncpa [#allocation6], 0
    %s17 = scalar_lea.sflag [#allocation6], 1
    %18 = vsyncpa %s17, 0
    %19 = vsyncpa [#allocation9], 0
    %20 = vsyncpa [#allocation12], 0
    %21 = vsyncpa [#allocation4], 0
    %s22 = scalar_lea.sflag [#allocation4], 1
    %23 = vsyncpa %s22, 0
    %24 = vsyncpa [#allocation15], 0
    %s25 = scalar_lea.sflag [#allocation15], 1
    %26 = vsyncpa %s25, 0
    loop: start=0, step=1, limit=4
    $region2: #{tpu_custom_call.1} parent=1 // loop_pre_header
      _
    $region3: #{tpu_custom_call.1} parent=1 // loop_header
      %s28 = sphi 0, %s32
      %p29 = scmp.ge.s32.totalorder %s28, 4
      %s38 = sphi 0, %s40
      %s41 = sphi 0, %s38
      %s42 = sphi 0, %s41
      %s58 = sphi 0, %s42
      %s64 = sphi 0, %s66
      %s67 = sphi 0, %s64
      %s68 = sphi 0, %s67
      %s84 = sphi 0, %s68
      %s90 = sphi 0, %s92
      %s93 = sphi 0, %s90
      %s94 = sphi 0, %s93
      %s110 = sphi 0, %s94
      %s114 = sphi 0, %s114
      %s116 = sphi 0, %s114
      %s117 = sphi 0, %s116
      %s131 = sphi 0, %s117
      %s135 = sphi 0, %s135
      %s137 = sphi 0, %s135
      %s138 = sphi 0, %s137
      %s152 = sphi 0, %s138
      %s156 = sphi 0, %s156
      %s158 = sphi 0, %s156
      %s159 = sphi 0, %s158
      %s173 = sphi 0, %s159
      %s179 = sphi 0, %s181
      %s182 = sphi 0, %s179
      %s183 = sphi 0, %s182
      %s199 = sphi 0, %s183
      %s205 = sphi 0, %s207
      %s208 = sphi 0, %s205
      %s209 = sphi 0, %s208
      %s225 = sphi 0, %s209
    $region4: #{tpu_custom_call.1} parent=1 // loop_header_branch
      %31 = sbr.rel (%p29) target = $region8
    $region5: #{tpu_custom_call.1} parent=1 // loop_body
      %s33 = ssub.s32 %s28, 1
      %s34 = ssub.s32 %s28, 2
      %s35 = sadd.s32 %s28, 1
      %s36 = ssub.s32 %s28, %s35
      %p37 = scmp.eq.s32.totalorder %s36, 0
      %s39 = sadd.s32 %s38, 1
      %s40 = scalar_select %p37, %s38, %s39
      %p43 = pneg %p37
      %p44 = scmp.eq.s32.totalorder %s28, 1
      %p45 = por %p43, %p44
      %p46 = scmp.ne.s32.totalorder %s38, %s41
      %p47 = scmp.eq.s32.totalorder %s28, 0
      %p48 = por %p46, %p47
      %p49 = scmp.ne.s32.totalorder %s38, %s41
      %p50 = scmp.eq.s32.totalorder %s33, 1
      %p51 = por %p49, %p50
      %p52 = scmp.ne.s32.totalorder %s41, %s42
      %p53 = scmp.eq.s32.totalorder %s33, 0
      %p54 = por %p52, %p53
      %p55 = scmp.ne.s32.totalorder %s41, %s42
      %p56 = scmp.eq.s32.totalorder %s34, 1
      %p57 = por %p55, %p56
      %p59 = scmp.ne.s32.totalorder %s42, %s58
      %p60 = scmp.eq.s32.totalorder %s34, 0
      %p61 = por %p59, %p60
      %s62 = ssub.s32 %s28, %s35
      %p63 = scmp.eq.s32.totalorder %s62, 0
      %s65 = sadd.s32 %s64, 1
      %s66 = scalar_select %p63, %s64, %s65
      %p69 = pneg %p63
      %p70 = scmp.eq.s32.totalorder %s28, 1
      %p71 = por %p69, %p70
      %p72 = scmp.ne.s32.totalorder %s64, %s67
      %p73 = scmp.eq.s32.totalorder %s28, 0
      %p74 = por %p72, %p73
      %p75 = scmp.ne.s32.totalorder %s64, %s67
      %p76 = scmp.eq.s32.totalorder %s33, 1
      %p77 = por %p75, %p76
      %p78 = scmp.ne.s32.totalorder %s67, %s68
      %p79 = scmp.eq.s32.totalorder %s33, 0
      %p80 = por %p78, %p79
      %p81 = scmp.ne.s32.totalorder %s67, %s68
      %p82 = scmp.eq.s32.totalorder %s34, 1
      %p83 = por %p81, %p82
      %p85 = scmp.ne.s32.totalorder %s68, %s84
      %p86 = scmp.eq.s32.totalorder %s34, 0
      %p87 = por %p85, %p86
      %s88 = ssub.s32 %s28, %s35
      %p89 = scmp.eq.s32.totalorder %s88, 0
      %s91 = sadd.s32 %s90, 1
      %s92 = scalar_select %p89, %s90, %s91
      %p95 = pneg %p89
      %p96 = scmp.eq.s32.totalorder %s28, 1
      %p97 = por %p95, %p96
      %p98 = scmp.ne.s32.totalorder %s90, %s93
      %p99 = scmp.eq.s32.totalorder %s28, 0
      %p100 = por %p98, %p99
      %p101 = scmp.ne.s32.totalorder %s90, %s93
      %p102 = scmp.eq.s32.totalorder %s33, 1
      %p103 = por %p101, %p102
      %p104 = scmp.ne.s32.totalorder %s93, %s94
      %p105 = scmp.eq.s32.totalorder %s33, 0
      %p106 = por %p104, %p105
      %p107 = scmp.ne.s32.totalorder %s93, %s94
      %p108 = scmp.eq.s32.totalorder %s34, 1
      %p109 = por %p107, %p108
      %p111 = scmp.ne.s32.totalorder %s94, %s110
      %p112 = scmp.eq.s32.totalorder %s34, 0
      %p113 = por %p111, %p112
      %s115 = sadd.s32 %s114, 1
      %p118 = scmp.eq.s32.totalorder %s28, 1
      %p119 = scmp.ne.s32.totalorder %s114, %s116
      %p120 = scmp.eq.s32.totalorder %s28, 0
      %p121 = por %p119, %p120
      %p122 = scmp.ne.s32.totalorder %s114, %s116
      %p123 = scmp.eq.s32.totalorder %s33, 1
      %p124 = por %p122, %p123
      %p125 = scmp.ne.s32.totalorder %s116, %s117
      %p126 = scmp.eq.s32.totalorder %s33, 0
      %p127 = por %p125, %p126
      %p128 = scmp.ne.s32.totalorder %s116, %s117
      %p129 = scmp.eq.s32.totalorder %s34, 1
      %p130 = por %p128, %p129
      %p132 = scmp.ne.s32.totalorder %s117, %s131
      %p133 = scmp.eq.s32.totalorder %s34, 0
      %p134 = por %p132, %p133
      %s136 = sadd.s32 %s135, 1
      %p139 = scmp.eq.s32.totalorder %s28, 1
      %p140 = scmp.ne.s32.totalorder %s135, %s137
      %p141 = scmp.eq.s32.totalorder %s28, 0
      %p142 = por %p140, %p141
      %p143 = scmp.ne.s32.totalorder %s135, %s137
      %p144 = scmp.eq.s32.totalorder %s33, 1
      %p145 = por %p143, %p144
      %p146 = scmp.ne.s32.totalorder %s137, %s138
      %p147 = scmp.eq.s32.totalorder %s33, 0
      %p148 = por %p146, %p147
      %p149 = scmp.ne.s32.totalorder %s137, %s138
      %p150 = scmp.eq.s32.totalorder %s34, 1
      %p151 = por %p149, %p150
      %p153 = scmp.ne.s32.totalorder %s138, %s152
      %p154 = scmp.eq.s32.totalorder %s34, 0
      %p155 = por %p153, %p154
      %s157 = sadd.s32 %s156, 1
      %p160 = scmp.eq.s32.totalorder %s28, 1
      %p161 = scmp.ne.s32.totalorder %s156, %s158
      %p162 = scmp.eq.s32.totalorder %s28, 0
      %p163 = por %p161, %p162
      %p164 = scmp.ne.s32.totalorder %s156, %s158
      %p165 = scmp.eq.s32.totalorder %s33, 1
      %p166 = por %p164, %p165
      %p167 = scmp.ne.s32.totalorder %s158, %s159
      %p168 = scmp.eq.s32.totalorder %s33, 0
      %p169 = por %p167, %p168
      %p170 = scmp.ne.s32.totalorder %s158, %s159
      %p171 = scmp.eq.s32.totalorder %s34, 1
      %p172 = por %p170, %p171
      %p174 = scmp.ne.s32.totalorder %s159, %s173
      %p175 = scmp.eq.s32.totalorder %s34, 0
      %p176 = por %p174, %p175
      %s177 = ssub.s32 %s28, %s35
      %p178 = scmp.eq.s32.totalorder %s177, 0
      %s180 = sadd.s32 %s179, 1
      %s181 = scalar_select %p178, %s179, %s180
      %p184 = pneg %p178
      %p185 = scmp.eq.s32.totalorder %s28, 1
      %p186 = por %p184, %p185
      %p187 = scmp.ne.s32.totalorder %s179, %s182
      %p188 = scmp.eq.s32.totalorder %s28, 0
      %p189 = por %p187, %p188
      %p190 = scmp.ne.s32.totalorder %s179, %s182
      %p191 = scmp.eq.s32.totalorder %s33, 1
      %p192 = por %p190, %p191
      %p193 = scmp.ne.s32.totalorder %s182, %s183
      %p194 = scmp.eq.s32.totalorder %s33, 0
      %p195 = por %p193, %p194
      %p196 = scmp.ne.s32.totalorder %s182, %s183
      %p197 = scmp.eq.s32.totalorder %s34, 1
      %p198 = por %p196, %p197
      %p200 = scmp.ne.s32.totalorder %s183, %s199
      %p201 = scmp.eq.s32.totalorder %s34, 0
      %p202 = por %p200, %p201
      %s203 = ssub.s32 %s28, %s35
      %p204 = scmp.eq.s32.totalorder %s203, 0
      %s206 = sadd.s32 %s205, 1
      %s207 = scalar_select %p204, %s205, %s206
      %p210 = pneg %p204
      %p211 = scmp.eq.s32.totalorder %s28, 1
      %p212 = por %p210, %p211
      %p213 = scmp.ne.s32.totalorder %s205, %s208
      %p214 = scmp.eq.s32.totalorder %s28, 0
      %p215 = por %p213, %p214
      %p216 = scmp.ne.s32.totalorder %s205, %s208
      %p217 = scmp.eq.s32.totalorder %s33, 1
      %p218 = por %p216, %p217
      %p219 = scmp.ne.s32.totalorder %s208, %s209
      %p220 = scmp.eq.s32.totalorder %s33, 0
      %p221 = por %p219, %p220
      %p222 = scmp.ne.s32.totalorder %s208, %s209
      %p223 = scmp.eq.s32.totalorder %s34, 1
      %p224 = por %p222, %p223
      %p226 = scmp.ne.s32.totalorder %s209, %s225
      %p227 = scmp.eq.s32.totalorder %s34, 0
      %p228 = por %p226, %p227
      %p229 = scmp.le.s32.totalorder 1, %s28
      %p230 = scmp.lt.s32.totalorder %s28, 3
      %p231 = pnand %p229, %p230
      %p232 = pneg %p231
      // Predicated region
      $region9: #{tpu_custom_call.1} parent=5 // pred_check
        _
      $region10: #{tpu_custom_call.1} parent=5 // pred_check_branch
        %234 = sbr.rel (%p231) target = $region12
      $region11: #{tpu_custom_call.1} parent=5 // pred_region
        %s235 = ssub.s32 %s28, 1
        // Predicated region
        $region13: #{tpu_custom_call.1} parent=11 // pred_check
          %p236 = pneg %p127
        $region14: #{tpu_custom_call.1} parent=11 // pred_check_branch
          %238 = sbr.rel (%p236) target = $region16
        $region15: #{tpu_custom_call.1} parent=11 // pred_region
          %s240 = ssub.s32 512, 512
          %241 = vsyncadd [#allocation9], %s240
          %s242 = sshll.u32 [#allocation8], 4
          %s243 = int_to_ptr.vmem [resolvable:$true] %s242
          %248 = dma.hbm_to_vmem [thread:$0]  %s3, 512, %s243, [#allocation9], 128, 128, 8
        $region16: #{tpu_custom_call.1} parent=11 // pred_fallthru
          _
        // Predicated region
        $region17: #{tpu_custom_call.1} parent=11 // pred_check
          %p249 = pneg %p148
        $region18: #{tpu_custom_call.1} parent=11 // pred_check_branch
          %251 = sbr.rel (%p249) target = $region20
        $region19: #{tpu_custom_call.1} parent=11 // pred_region
          %s253 = ssub.s32 512, 512
          %254 = vsyncadd [#allocation9], %s253
          %s255 = sshll.u32 [#allocation10], 4
          %s256 = int_to_ptr.vmem [resolvable:$true] %s255
          %261 = dma.hbm_to_vmem [thread:$0]  %s4, 512, %s256, [#allocation9], 128, 128, 8
        $region20: #{tpu_custom_call.1} parent=11 // pred_fallthru
          _
        // Predicated region
        $region21: #{tpu_custom_call.1} parent=11 // pred_check
          %p262 = pneg %p169
        $region22: #{tpu_custom_call.1} parent=11 // pred_check_branch
          %264 = sbr.rel (%p262) target = $region24
        $region23: #{tpu_custom_call.1} parent=11 // pred_region
          %s266 = ssub.s32 512, 512
          %267 = vsyncadd [#allocation12], %s266
          %s268 = sshll.u32 [#allocation11], 4
          %s269 = int_to_ptr.vmem [resolvable:$true] %s268
          %274 = dma.hbm_to_vmem [thread:$0]  %s5, 512, %s269, [#allocation12], 128, 128, 8
        $region24: #{tpu_custom_call.1} parent=11 // pred_fallthru
          _
      $region12: #{tpu_custom_call.1} parent=5 // pred_fallthru
        _
      %p275 = scmp.lt.s32.totalorder %s28, 2
      // Predicated region
      $region25: #{tpu_custom_call.1} parent=5 // pred_check
        %p276 = pneg %p275
      $region26: #{tpu_custom_call.1} parent=5 // pred_check_branch
        %278 = sbr.rel (%p276) target = $region28
      $region27: #{tpu_custom_call.1} parent=5 // pred_region
        // Predicated region
        $region29: #{tpu_custom_call.1} parent=27 // pred_check
          %p279 = pneg %p48
        $region30: #{tpu_custom_call.1} parent=27 // pred_check_branch
          %281 = sbr.rel (%p279) target = $region32
        $region31: #{tpu_custom_call.1} parent=27 // pred_region
          %s282 = sand.u32 %s38, 1
          %s283 = scalar_lea.sflag [#allocation3], %s282
          %s284 = sand.u32 %s38, 1
          %s285 = smul.addr %s284, 8
          %s286 = scalar_lea.vmem [#allocation2], %s285
          %s288 = ssub.s32 128, 128
          %289 = vsyncadd %s283, %s288
          %s290 = smul.addr %s28, 128
          %s291 = scalar_lea.hbm %s0, %s290
          %s293 = sshll.u32 %s286, 4
          %s294 = int_to_ptr.vmem [resolvable:$true] %s293
          %296 = dma.hbm_to_vmem [thread:$0]  %s291, 128, %s294, %s283
        $region32: #{tpu_custom_call.1} parent=27 // pred_fallthru
          _
        // Predicated region
        $region33: #{tpu_custom_call.1} parent=27 // pred_check
          %p297 = pneg %p74
        $region34: #{tpu_custom_call.1} parent=27 // pred_check_branch
          %299 = sbr.rel (%p297) target = $region36
        $region35: #{tpu_custom_call.1} parent=27 // pred_region
          %s300 = sand.u32 %s28, 1
          %s301 = scalar_lea.sflag [#allocation6], %s300
          %s302 = sand.u32 %s64, 1
          %s303 = smul.addr %s302, 8
          %s304 = scalar_lea.vmem [#allocation5], %s303
          %s306 = ssub.s32 128, 128
          %307 = vsyncadd %s301, %s306
          %s308 = smul.addr %s28, 128
          %s309 = scalar_lea.hbm %s1, %s308
          %s311 = sshll.u32 %s304, 4
          %s312 = int_to_ptr.vmem [resolvable:$true] %s311
          %314 = dma.hbm_to_vmem [thread:$0]  %s309, 128, %s312, %s301
        $region36: #{tpu_custom_call.1} parent=27 // pred_fallthru
          _
        // Predicated region
        $region37: #{tpu_custom_call.1} parent=27 // pred_check
          %p315 = pneg %p100
        $region38: #{tpu_custom_call.1} parent=27 // pred_check_branch
          %317 = sbr.rel (%p315) target = $region40
        $region39: #{tpu_custom_call.1} parent=27 // pred_region
          %s318 = sand.u32 %s28, 1
          %s319 = scalar_lea.sflag [#allocation6], %s318
          %s320 = sand.u32 %s90, 1
          %s321 = smul.addr %s320, 8
          %s322 = scalar_lea.vmem [#allocation7], %s321
          %s324 = ssub.s32 128, 128
          %325 = vsyncadd %s319, %s324
          %s326 = smul.addr %s28, 128
          %s327 = scalar_lea.hbm %s2, %s326
          %s329 = sshll.u32 %s322, 4
          %s330 = int_to_ptr.vmem [resolvable:$true] %s329
          %332 = dma.hbm_to_vmem [thread:$0]  %s327, 128, %s330, %s319
        $region40: #{tpu_custom_call.1} parent=27 // pred_fallthru
          _
      $region28: #{tpu_custom_call.1} parent=5 // pred_fallthru
        _
      %p333 = scmp.le.s32.totalorder 1, %s28
      %p334 = scmp.lt.s32.totalorder %s28, 3
      %p335 = pnand %p333, %p334
      %p336 = pneg %p335
      // Predicated region
      $region41: #{tpu_custom_call.1} parent=5 // pred_check
        _
      $region42: #{tpu_custom_call.1} parent=5 // pred_check_branch
        %338 = sbr.rel (%p335) target = $region44
      $region43: #{tpu_custom_call.1} parent=5 // pred_region
        %s339 = ssub.s32 %s28, 1
        %s340 = sand.u32 %s41, 1
        %s341 = scalar_lea.sflag [#allocation3], %s340
        %s342 = sand.u32 %s41, 1
        %s343 = smul.addr %s342, 8
        %s344 = scalar_lea.vmem [#allocation2], %s343
        // Predicated region
        $region45: #{tpu_custom_call.1} parent=43 // pred_check
          %p345 = pneg %p54
        $region46: #{tpu_custom_call.1} parent=43 // pred_check_branch
          %347 = sbr.rel (%p345) target = $region48
        $region47: #{tpu_custom_call.1} parent=43 // pred_region
          %348 = dma.done %s341, 128
        $region48: #{tpu_custom_call.1} parent=43 // pred_fallthru
          _
        %s349 = sand.u32 %s33, 1
        %s350 = scalar_lea.sflag [#allocation6], %s349
        %s351 = sand.u32 %s67, 1
        %s352 = smul.addr %s351, 8
        %s353 = scalar_lea.vmem [#allocation5], %s352
        // Predicated region
        $region49: #{tpu_custom_call.1} parent=43 // pred_check
          %p354 = pneg %p80
        $region50: #{tpu_custom_call.1} parent=43 // pred_check_branch
          %356 = sbr.rel (%p354) target = $region52
        $region51: #{tpu_custom_call.1} parent=43 // pred_region
          %357 = dma.done %s350, 128
        $region52: #{tpu_custom_call.1} parent=43 // pred_fallthru
          _
        %s358 = sand.u32 %s33, 1
        %s359 = scalar_lea.sflag [#allocation6], %s358
        %s360 = sand.u32 %s93, 1
        %s361 = smul.addr %s360, 8
        %s362 = scalar_lea.vmem [#allocation7], %s361
        // Predicated region
        $region53: #{tpu_custom_call.1} parent=43 // pred_check
          %p363 = pneg %p106
        $region54: #{tpu_custom_call.1} parent=43 // pred_check_branch
          %365 = sbr.rel (%p363) target = $region56
        $region55: #{tpu_custom_call.1} parent=43 // pred_region
          %366 = dma.done %s359, 128
        $region56: #{tpu_custom_call.1} parent=43 // pred_fallthru
          _
        // Predicated region
        $region57: #{tpu_custom_call.1} parent=43 // pred_check
          %p367 = pneg %p127
        $region58: #{tpu_custom_call.1} parent=43 // pred_check_branch
          %369 = sbr.rel (%p367) target = $region60
        $region59: #{tpu_custom_call.1} parent=43 // pred_region
          %370 = dma.done [#allocation9], 512
        $region60: #{tpu_custom_call.1} parent=43 // pred_fallthru
          _
        // Predicated region
        $region61: #{tpu_custom_call.1} parent=43 // pred_check
          %p371 = pneg %p148
        $region62: #{tpu_custom_call.1} parent=43 // pred_check_branch
          %373 = sbr.rel (%p371) target = $region64
        $region63: #{tpu_custom_call.1} parent=43 // pred_region
          %374 = dma.done [#allocation9], 512
        $region64: #{tpu_custom_call.1} parent=43 // pred_fallthru
          _
        // Predicated region
        $region65: #{tpu_custom_call.1} parent=43 // pred_check
          %p375 = pneg %p169
        $region66: #{tpu_custom_call.1} parent=43 // pred_check_branch
          %377 = sbr.rel (%p375) target = $region68
        $region67: #{tpu_custom_call.1} parent=43 // pred_region
          %378 = dma.done [#allocation12], 512
        $region68: #{tpu_custom_call.1} parent=43 // pred_fallthru
          _
        %s379 = sand.u32 %s41, 1
        %s380 = scalar_lea.sflag [#allocation3], %s379
        %s381 = sand.u32 %s41, 1
        %s382 = smul.addr %s381, 8
        %s383 = scalar_lea.vmem [#allocation2], %s382
        %p384 = pneg %p54
        %p385 = pneg %p51
        %s386 = sand.u32 %s33, 1
        %s387 = scalar_lea.sflag [#allocation6], %s386
        %s388 = sand.u32 %s67, 1
        %s389 = smul.addr %s388, 8
        %s390 = scalar_lea.vmem [#allocation5], %s389
        %p391 = pneg %p80
        %p392 = pneg %p77
        %s393 = sand.u32 %s33, 1
        %s394 = scalar_lea.sflag [#allocation6], %s393
        %s395 = sand.u32 %s93, 1
        %s396 = smul.addr %s395, 8
        %s397 = scalar_lea.vmem [#allocation7], %s396
        %p398 = pneg %p106
        %p399 = pneg %p103
        %p400 = pneg %p127
        %p401 = pneg %p124
        %p402 = pneg %p148
        %p403 = pneg %p145
        %p404 = pneg %p169
        %p405 = pneg %p166
        %p406 = pneg %p195
        %p407 = pneg %p192
        %s408 = sand.u32 %s182, 1
        %s409 = scalar_lea.sflag [#allocation4], %s408
        %s410 = sand.u32 %s182, 1
        %s411 = smul.addr %s410, 32
        %s412 = scalar_lea.vmem [#allocation13], %s411
        %p413 = pneg %p221
        %p414 = pneg %p218
        %s415 = sand.u32 %s208, 1
        %s416 = scalar_lea.sflag [#allocation15], %s415
        %s417 = sand.u32 %s208, 1
        %s418 = smul.addr %s417, 32
        %s419 = scalar_lea.vmem [#allocation14], %s418
        %v420 = vld [vmem:[%s344] sm:$0xff]
        %v421 = vld [vmem:[%s353] sm:$0xff]
        %v422 = vld [vmem:[%s362] sm:$0xff]
        %v423 = vld [vmem:[#allocation8] sm:$0xff]
        %v424 = vld [vmem:[#allocation8 + $0x8] sm:$0xff]
        %v425 = vld [vmem:[#allocation8 + $0x10] sm:$0xff]
        %v426 = vld [vmem:[#allocation8 + $0x18] sm:$0xff]
        %vm427 = vcmask 261120
        %v429 = vsel %vm427, %v420, 0
        %431 = vmatprep.subr.mxu0 0.0
        %432 = vmatpush1.msra.mxu0 0.0
        %433 = vmatprep.subr.mxu0 0.0
        %434 = vmatpush1.msra.mxu0 0.0
        %435 = vmatprep.subr.mxu0 0.0
        %436 = vmatpush1.msra.mxu0 0.0
        %437 = vmatprep.subr.mxu0 0.0
        %438 = vmatpush1.msra.mxu0 0.0
        %439 = vmatprep.subr.mxu0 0.0
        %440 = vmatpush1.msra.mxu0 0.0
        %441 = vmatprep.subr.mxu0 0.0
        %442 = vmatpush1.msra.mxu0 0.0
        %443 = vmatprep.subr.mxu0 0.0
        %444 = vmatpush1.msra.mxu0 0.0
        %445 = vmatprep.subr.mxu0 0.0
        %446 = vmatpush1.msra.mxu0 0.0
        %447 = vmatprep.subr.mxu0 0.0
        %448 = vmatpush1.msra.mxu0 0.0
        %449 = vmatprep.subr.mxu0 0.0
        %450 = vmatpush1.msra.mxu0 0.0
        %451 = vmatprep.subr.mxu0 0.0
        %452 = vmatpush1.msra.mxu0 0.0
        %453 = vmatprep.subr.mxu0 0.0
        %454 = vmatpush1.msra.mxu0 0.0
        %455 = vmatprep.subr.mxu0 0.0
        %456 = vmatpush1.msra.mxu0 %v426
        %457 = vmatprep.subr.mxu0 0.0
        %458 = vmatpush1.msra.mxu0 %v425
        %459 = vmatprep.subr.mxu0 0.0
        %460 = vmatpush1.msra.mxu0 %v424
        %461 = vmatprep.subr.mxu0 0.0
        %462 = vmatpush1.msra.mxu0 %v423
        %463 = vmatprep.subr.mxu0 0.0
        %464 = vmatpush2.msra.mxu0 0.0
        %465 = vmatprep.subr.mxu0 0.0
        %466 = vmatpush2.msra.mxu0 0.0
        %467 = vmatprep.subr.mxu0 0.0
        %468 = vmatpush2.msra.mxu0 0.0
        %469 = vmatprep.subr.mxu0 0.0
        %470 = vmatpush2.msra.mxu0 0.0
        %471 = vmatprep.subr.mxu0 0.0
        %472 = vmatpush2.msra.mxu0 0.0
        %473 = vmatprep.subr.mxu0 0.0
        %474 = vmatpush2.msra.mxu0 0.0
        %475 = vmatprep.subr.mxu0 0.0
        %476 = vmatpush2.msra.mxu0 0.0
        %477 = vmatprep.subr.mxu0 0.0
        %478 = vmatpush2.msra.mxu0 0.0
        %479 = vmatprep.subr.mxu0 0.0
        %480 = vmatpush2.msra.mxu0 0.0
        %481 = vmatprep.subr.mxu0 0.0
        %482 = vmatpush2.msra.mxu0 0.0
        %483 = vmatprep.subr.mxu0 0.0
        %484 = vmatpush2.msra.mxu0 0.0
        %485 = vmatprep.subr.mxu0 0.0
        %486 = vmatpush2.msra.mxu0 0.0
        %487 = vmatprep.subr.mxu0 0.0
        %488 = vmatpush2.msra.mxu0 0.0
        %489 = vmatprep.subr.mxu0 0.0
        %490 = vmatpush2.msra.mxu0 0.0
        %491 = vmatprep.subr.mxu0 0.0
        %492 = vmatpush2.msra.mxu0 0.0
        %493 = vmatprep.subr.mxu0 0.0
        %494 = vmatpush2.msra.mxu0 0.0
        %495 = vmatprep.mubr.f32.mxu0 0.0
        %496 = vmatmul.mubr.f32.gmra.mxu0 %v429
        %v497 = vpop.f32.mrf.mxu0
        %v498 = vadd.f32 0.0, %v497
        %v499 = vpop.f32.mrf.mxu0
        %500 = vdwg.mxu0
        %v501 = vld [vmem:[#allocation10] sm:$0xff]
        %v502 = vld [vmem:[#allocation10 + $0x8] sm:$0xff]
        %v503 = vld [vmem:[#allocation10 + $0x10] sm:$0xff]
        %v504 = vld [vmem:[#allocation10 + $0x18] sm:$0xff]
        %v506 = vsel %vm427, %v421, 0
        %508 = vmatprep.subr.mxu0 0.0
        %509 = vmatpush1.msra.mxu0 0.0
        %510 = vmatprep.subr.mxu0 0.0
        %511 = vmatpush1.msra.mxu0 0.0
        %512 = vmatprep.subr.mxu0 0.0
        %513 = vmatpush1.msra.mxu0 0.0
        %514 = vmatprep.subr.mxu0 0.0
        %515 = vmatpush1.msra.mxu0 0.0
        %516 = vmatprep.subr.mxu0 0.0
        %517 = vmatpush1.msra.mxu0 0.0
        %518 = vmatprep.subr.mxu0 0.0
        %519 = vmatpush1.msra.mxu0 0.0
        %520 = vmatprep.subr.mxu0 0.0
        %521 = vmatpush1.msra.mxu0 0.0
        %522 = vmatprep.subr.mxu0 0.0
        %523 = vmatpush1.msra.mxu0 0.0
        %524 = vmatprep.subr.mxu0 0.0
        %525 = vmatpush1.msra.mxu0 0.0
        %526 = vmatprep.subr.mxu0 0.0
        %527 = vmatpush1.msra.mxu0 0.0
        %528 = vmatprep.subr.mxu0 0.0
        %529 = vmatpush1.msra.mxu0 0.0
        %530 = vmatprep.subr.mxu0 0.0
        %531 = vmatpush1.msra.mxu0 0.0
        %532 = vmatprep.subr.mxu0 0.0
        %533 = vmatpush1.msra.mxu0 %v504
        %534 = vmatprep.subr.mxu0 0.0
        %535 = vmatpush1.msra.mxu0 %v503
        %536 = vmatprep.subr.mxu0 0.0
        %537 = vmatpush1.msra.mxu0 %v502
        %538 = vmatprep.subr.mxu0 0.0
        %539 = vmatpush1.msra.mxu0 %v501
        %540 = vmatprep.subr.mxu0 0.0
        %541 = vmatpush2.msra.mxu0 0.0
        %542 = vmatprep.subr.mxu0 0.0
        %543 = vmatpush2.msra.mxu0 0.0
        %544 = vmatprep.subr.mxu0 0.0
        %545 = vmatpush2.msra.mxu0 0.0
        %546 = vmatprep.subr.mxu0 0.0
        %547 = vmatpush2.msra.mxu0 0.0
        %548 = vmatprep.subr.mxu0 0.0
        %549 = vmatpush2.msra.mxu0 0.0
        %550 = vmatprep.subr.mxu0 0.0
        %551 = vmatpush2.msra.mxu0 0.0
        %552 = vmatprep.subr.mxu0 0.0
        %553 = vmatpush2.msra.mxu0 0.0
        %554 = vmatprep.subr.mxu0 0.0
        %555 = vmatpush2.msra.mxu0 0.0
        %556 = vmatprep.subr.mxu0 0.0
        %557 = vmatpush2.msra.mxu0 0.0
        %558 = vmatprep.subr.mxu0 0.0
        %559 = vmatpush2.msra.mxu0 0.0
        %560 = vmatprep.subr.mxu0 0.0
        %561 = vmatpush2.msra.mxu0 0.0
        %562 = vmatprep.subr.mxu0 0.0
        %563 = vmatpush2.msra.mxu0 0.0
        %564 = vmatprep.subr.mxu0 0.0
        %565 = vmatpush2.msra.mxu0 0.0
        %566 = vmatprep.subr.mxu0 0.0
        %567 = vmatpush2.msra.mxu0 0.0
        %568 = vmatprep.subr.mxu0 0.0
        %569 = vmatpush2.msra.mxu0 0.0
        %570 = vmatprep.subr.mxu0 0.0
        %571 = vmatpush2.msra.mxu0 0.0
        %572 = vmatprep.mubr.f32.mxu0 0.0
        %573 = vmatmul.mubr.f32.gmra.mxu0 %v506
        %v574 = vpop.f32.mrf.mxu0
        %v575 = vadd.f32 0.0, %v574
        %v576 = vpop.f32.mrf.mxu0
        %577 = vdwg.mxu0
        %v578 = vld [vmem:[#allocation11] sm:$0xff]
        %v579 = vld [vmem:[#allocation11 + $0x8] sm:$0xff]
        %v580 = vld [vmem:[#allocation11 + $0x10] sm:$0xff]
        %v581 = vld [vmem:[#allocation11 + $0x18] sm:$0xff]
        %v583 = vsel %vm427, %v422, 0
        %585 = vmatprep.subr.mxu0 0.0
        %586 = vmatpush1.msra.mxu0 0.0
        %587 = vmatprep.subr.mxu0 0.0
        %588 = vmatpush1.msra.mxu0 0.0
        %589 = vmatprep.subr.mxu0 0.0
        %590 = vmatpush1.msra.mxu0 0.0
        %591 = vmatprep.subr.mxu0 0.0
        %592 = vmatpush1.msra.mxu0 0.0
        %593 = vmatprep.subr.mxu0 0.0
        %594 = vmatpush1.msra.mxu0 0.0
        %595 = vmatprep.subr.mxu0 0.0
        %596 = vmatpush1.msra.mxu0 0.0
        %597 = vmatprep.subr.mxu0 0.0
        %598 = vmatpush1.msra.mxu0 0.0
        %599 = vmatprep.subr.mxu0 0.0
        %600 = vmatpush1.msra.mxu0 0.0
        %601 = vmatprep.subr.mxu0 0.0
        %602 = vmatpush1.msra.mxu0 0.0
        %603 = vmatprep.subr.mxu0 0.0
        %604 = vmatpush1.msra.mxu0 0.0
        %605 = vmatprep.subr.mxu0 0.0
        %606 = vmatpush1.msra.mxu0 0.0
        %607 = vmatprep.subr.mxu0 0.0
        %608 = vmatpush1.msra.mxu0 0.0
        %609 = vmatprep.subr.mxu0 0.0
        %610 = vmatpush1.msra.mxu0 %v581
        %611 = vmatprep.subr.mxu0 0.0
        %612 = vmatpush1.msra.mxu0 %v580
        %613 = vmatprep.subr.mxu0 0.0
        %614 = vmatpush1.msra.mxu0 %v579
        %615 = vmatprep.subr.mxu0 0.0
        %616 = vmatpush1.msra.mxu0 %v578
        %617 = vmatprep.subr.mxu0 0.0
        %618 = vmatpush2.msra.mxu0 0.0
        %619 = vmatprep.subr.mxu0 0.0
        %620 = vmatpush2.msra.mxu0 0.0
        %621 = vmatprep.subr.mxu0 0.0
        %622 = vmatpush2.msra.mxu0 0.0
        %623 = vmatprep.subr.mxu0 0.0
        %624 = vmatpush2.msra.mxu0 0.0
        %625 = vmatprep.subr.mxu0 0.0
        %626 = vmatpush2.msra.mxu0 0.0
        %627 = vmatprep.subr.mxu0 0.0
        %628 = vmatpush2.msra.mxu0 0.0
        %629 = vmatprep.subr.mxu0 0.0
        %630 = vmatpush2.msra.mxu0 0.0
        %631 = vmatprep.subr.mxu0 0.0
        %632 = vmatpush2.msra.mxu0 0.0
        %633 = vmatprep.subr.mxu0 0.0
        %634 = vmatpush2.msra.mxu0 0.0
        %635 = vmatprep.subr.mxu0 0.0
        %636 = vmatpush2.msra.mxu0 0.0
        %637 = vmatprep.subr.mxu0 0.0
        %638 = vmatpush2.msra.mxu0 0.0
        %639 = vmatprep.subr.mxu0 0.0
        %640 = vmatpush2.msra.mxu0 0.0
        %641 = vmatprep.subr.mxu0 0.0
        %642 = vmatpush2.msra.mxu0 0.0
        %643 = vmatprep.subr.mxu0 0.0
        %644 = vmatpush2.msra.mxu0 0.0
        %645 = vmatprep.subr.mxu0 0.0
        %646 = vmatpush2.msra.mxu0 0.0
        %647 = vmatprep.subr.mxu0 0.0
        %648 = vmatpush2.msra.mxu0 0.0
        %649 = vmatprep.mubr.f32.mxu0 0.0
        %650 = vmatmul.mubr.f32.gmra.mxu0 %v583
        %v651 = vpop.f32.mrf.mxu0
        %v652 = vadd.f32 0.0, %v651
        %v653 = vpop.f32.mrf.mxu0
        %654 = vdwg.mxu0
        %vm655 = vcmask 64512
        %v657 = vsel %vm655, %v498, 0
        %v660 = vsel %vm655, %v575, 0
        %662 = vmatprep.subr.mxu0 0.0
        %663 = vmatpush1.xpose.msra.mxu0 0.0
        %664 = vmatprep.subr.mxu0 0.0
        %665 = vmatpush1.xpose.msra.mxu0 0.0
        %666 = vmatprep.subr.mxu0 0.0
        %667 = vmatpush1.xpose.msra.mxu0 0.0
        %668 = vmatprep.subr.mxu0 0.0
        %669 = vmatpush1.xpose.msra.mxu0 0.0
        %670 = vmatprep.subr.mxu0 0.0
        %671 = vmatpush1.xpose.msra.mxu0 0.0
        %672 = vmatprep.subr.mxu0 0.0
        %673 = vmatpush1.xpose.msra.mxu0 0.0
        %674 = vmatprep.subr.mxu0 0.0
        %675 = vmatpush1.xpose.msra.mxu0 0.0
        %676 = vmatprep.subr.mxu0 0.0
        %677 = vmatpush1.xpose.msra.mxu0 0.0
        %678 = vmatprep.subr.mxu0 0.0
        %679 = vmatpush1.xpose.msra.mxu0 0.0
        %680 = vmatprep.subr.mxu0 0.0
        %681 = vmatpush1.xpose.msra.mxu0 0.0
        %682 = vmatprep.subr.mxu0 0.0
        %683 = vmatpush1.xpose.msra.mxu0 0.0
        %684 = vmatprep.subr.mxu0 0.0
        %685 = vmatpush1.xpose.msra.mxu0 0.0
        %686 = vmatprep.subr.mxu0 0.0
        %687 = vmatpush1.xpose.msra.mxu0 0.0
        %688 = vmatprep.subr.mxu0 0.0
        %689 = vmatpush1.xpose.msra.mxu0 0.0
        %690 = vmatprep.subr.mxu0 0.0
        %691 = vmatpush1.xpose.msra.mxu0 0.0
        %692 = vmatprep.subr.mxu0 0.0
        %693 = vmatpush1.xpose.msra.mxu0 %v660
        %694 = vmatprep.subr.mxu0 0.0
        %695 = vmatpush2.xpose.msra.mxu0 0.0
        %696 = vmatprep.subr.mxu0 0.0
        %697 = vmatpush2.xpose.msra.mxu0 0.0
        %698 = vmatprep.subr.mxu0 0.0
        %699 = vmatpush2.xpose.msra.mxu0 0.0
        %700 = vmatprep.subr.mxu0 0.0
        %701 = vmatpush2.xpose.msra.mxu0 0.0
        %702 = vmatprep.subr.mxu0 0.0
        %703 = vmatpush2.xpose.msra.mxu0 0.0
        %704 = vmatprep.subr.mxu0 0.0
        %705 = vmatpush2.xpose.msra.mxu0 0.0
        %706 = vmatprep.subr.mxu0 0.0
        %707 = vmatpush2.xpose.msra.mxu0 0.0
        %708 = vmatprep.subr.mxu0 0.0
        %709 = vmatpush2.xpose.msra.mxu0 0.0
        %710 = vmatprep.subr.mxu0 0.0
        %711 = vmatpush2.xpose.msra.mxu0 0.0
        %712 = vmatprep.subr.mxu0 0.0
        %713 = vmatpush2.xpose.msra.mxu0 0.0
        %714 = vmatprep.subr.mxu0 0.0
        %715 = vmatpush2.xpose.msra.mxu0 0.0
        %716 = vmatprep.subr.mxu0 0.0
        %717 = vmatpush2.xpose.msra.mxu0 0.0
        %718 = vmatprep.subr.mxu0 0.0
        %719 = vmatpush2.xpose.msra.mxu0 0.0
        %720 = vmatprep.subr.mxu0 0.0
        %721 = vmatpush2.xpose.msra.mxu0 0.0
        %722 = vmatprep.subr.mxu0 0.0
        %723 = vmatpush2.xpose.msra.mxu0 0.0
        %724 = vmatprep.subr.mxu0 0.0
        %725 = vmatpush2.xpose.msra.mxu0 0.0
        %726 = vmatprep.mubr.f32.mxu0 0.0
        %727 = vmatmul.mubr.f32.gmra.mxu0 %v657
        %v728 = vpop.f32.mrf.mxu0
        %v729 = vadd.f32 0.0, %v728
        %v730 = vpop.f32.mrf.mxu0
        %731 = vdwg.mxu0
        %v732 = vmul.f32 %v729, 0.35355338
        %v733 = vsel %vm655, %v732, -inf
        %734 = vmax.xlane.f32.xlu0 %v733
        %v735 = vpop.xlane.xlu0 %734
        %v736 = vsub.f32 %v732, %v735
        %v737 = vmul.f32 %v736, 1.442695
        %v738 = vpow.pop %v737
        %v739 = vsel %vm655, %v738, 0.0
        %740 = vadd.xlane.f32.xlu0 %v739
        %v741 = vpop.xlane.xlu0 %740
        %v742 = vrcp.pop %v741
        %v743 = vmul.f32 %v738, %v742
        %v745 = vsel %vm655, %v743, 0
        %747 = vmatprep.subr.mxu0 0.0
        %748 = vmatpush1.msra.mxu0 0.0
        %749 = vmatprep.subr.mxu0 0.0
        %750 = vmatpush1.msra.mxu0 0.0
        %751 = vmatprep.subr.mxu0 0.0
        %752 = vmatpush1.msra.mxu0 0.0
        %753 = vmatprep.subr.mxu0 0.0
        %754 = vmatpush1.msra.mxu0 0.0
        %755 = vmatprep.subr.mxu0 0.0
        %756 = vmatpush1.msra.mxu0 0.0
        %757 = vmatprep.subr.mxu0 0.0
        %758 = vmatpush1.msra.mxu0 0.0
        %759 = vmatprep.subr.mxu0 0.0
        %760 = vmatpush1.msra.mxu0 0.0
        %761 = vmatprep.subr.mxu0 0.0
        %762 = vmatpush1.msra.mxu0 0.0
        %763 = vmatprep.subr.mxu0 0.0
        %764 = vmatpush1.msra.mxu0 0.0
        %765 = vmatprep.subr.mxu0 0.0
        %766 = vmatpush1.msra.mxu0 0.0
        %767 = vmatprep.subr.mxu0 0.0
        %768 = vmatpush1.msra.mxu0 0.0
        %769 = vmatprep.subr.mxu0 0.0
        %770 = vmatpush1.msra.mxu0 0.0
        %771 = vmatprep.subr.mxu0 0.0
        %772 = vmatpush1.msra.mxu0 0.0
        %773 = vmatprep.subr.mxu0 0.0
        %774 = vmatpush1.msra.mxu0 0.0
        %775 = vmatprep.subr.mxu0 0.0
        %776 = vmatpush1.msra.mxu0 0.0
        %777 = vmatprep.subr.mxu0 0.0
        %778 = vmatpush1.msra.mxu0 %v652
        %779 = vmatprep.subr.mxu0 0.0
        %780 = vmatpush2.msra.mxu0 0.0
        %781 = vmatprep.subr.mxu0 0.0
        %782 = vmatpush2.msra.mxu0 0.0
        %783 = vmatprep.subr.mxu0 0.0
        %784 = vmatpush2.msra.mxu0 0.0
        %785 = vmatprep.subr.mxu0 0.0
        %786 = vmatpush2.msra.mxu0 0.0
        %787 = vmatprep.subr.mxu0 0.0
        %788 = vmatpush2.msra.mxu0 0.0
        %789 = vmatprep.subr.mxu0 0.0
        %790 = vmatpush2.msra.mxu0 0.0
        %791 = vmatprep.subr.mxu0 0.0
        %792 = vmatpush2.msra.mxu0 0.0
        %793 = vmatprep.subr.mxu0 0.0
        %794 = vmatpush2.msra.mxu0 0.0
        %795 = vmatprep.subr.mxu0 0.0
        %796 = vmatpush2.msra.mxu0 0.0
        %797 = vmatprep.subr.mxu0 0.0
        %798 = vmatpush2.msra.mxu0 0.0
        %799 = vmatprep.subr.mxu0 0.0
        %800 = vmatpush2.msra.mxu0 0.0
        %801 = vmatprep.subr.mxu0 0.0
        %802 = vmatpush2.msra.mxu0 0.0
        %803 = vmatprep.subr.mxu0 0.0
        %804 = vmatpush2.msra.mxu0 0.0
        %805 = vmatprep.subr.mxu0 0.0
        %806 = vmatpush2.msra.mxu0 0.0
        %807 = vmatprep.subr.mxu0 0.0
        %808 = vmatpush2.msra.mxu0 0.0
        %809 = vmatprep.subr.mxu0 0.0
        %810 = vmatpush2.msra.mxu0 0.0
        %811 = vmatprep.mubr.f32.mxu0 0.0
        %812 = vmatmul.mubr.f32.gmra.mxu0 %v745
        %v813 = vpop.f32.mrf.mxu0
        %v814 = vadd.f32 0.0, %v813
        %v815 = vpop.f32.mrf.mxu0
        %816 = vdwg.mxu0
        %817 = vst.msk [vmem:[%s412] sm:$0xff] %vm655, %v743
        %818 = vst.msk [vmem:[%s419] sm:$0xff] %vm655, %v814
        %819 = vrot.lane.b32.xlu0 %v498, 120
        %v820 = vpop.permute.xlu0 %819
        %821 = vrot.lane.b32.xlu0 %v575, 120
        %v822 = vpop.permute.xlu0 %821
        %v823 = vsel %vm655, %v820, 0
        %v825 = vsel %vm655, %v822, 0
        %827 = vmatprep.subr.mxu0 0.0
        %828 = vmatpush1.xpose.msra.mxu0 0.0
        %829 = vmatprep.subr.mxu0 0.0
        %830 = vmatpush1.xpose.msra.mxu0 0.0
        %831 = vmatprep.subr.mxu0 0.0
        %832 = vmatpush1.xpose.msra.mxu0 0.0
        %833 = vmatprep.subr.mxu0 0.0
        %834 = vmatpush1.xpose.msra.mxu0 0.0
        %835 = vmatprep.subr.mxu0 0.0
        %836 = vmatpush1.xpose.msra.mxu0 0.0
        %837 = vmatprep.subr.mxu0 0.0
        %838 = vmatpush1.xpose.msra.mxu0 0.0
        %839 = vmatprep.subr.mxu0 0.0
        %840 = vmatpush1.xpose.msra.mxu0 0.0
        %841 = vmatprep.subr.mxu0 0.0
        %842 = vmatpush1.xpose.msra.mxu0 0.0
        %843 = vmatprep.subr.mxu0 0.0
        %844 = vmatpush1.xpose.msra.mxu0 0.0
        %845 = vmatprep.subr.mxu0 0.0
        %846 = vmatpush1.xpose.msra.mxu0 0.0
        %847 = vmatprep.subr.mxu0 0.0
        %848 = vmatpush1.xpose.msra.mxu0 0.0
        %849 = vmatprep.subr.mxu0 0.0
        %850 = vmatpush1.xpose.msra.mxu0 0.0
        %851 = vmatprep.subr.mxu0 0.0
        %852 = vmatpush1.xpose.msra.mxu0 0.0
        %853 = vmatprep.subr.mxu0 0.0
        %854 = vmatpush1.xpose.msra.mxu0 0.0
        %855 = vmatprep.subr.mxu0 0.0
        %856 = vmatpush1.xpose.msra.mxu0 0.0
        %857 = vmatprep.subr.mxu0 0.0
        %858 = vmatpush1.xpose.msra.mxu0 %v825
        %859 = vmatprep.subr.mxu0 0.0
        %860 = vmatpush2.xpose.msra.mxu0 0.0
        %861 = vmatprep.subr.mxu0 0.0
        %862 = vmatpush2.xpose.msra.mxu0 0.0
        %863 = vmatprep.subr.mxu0 0.0
        %864 = vmatpush2.xpose.msra.mxu0 0.0
        %865 = vmatprep.subr.mxu0 0.0
        %866 = vmatpush2.xpose.msra.mxu0 0.0
        %867 = vmatprep.subr.mxu0 0.0
        %868 = vmatpush2.xpose.msra.mxu0 0.0
        %869 = vmatprep.subr.mxu0 0.0
        %870 = vmatpush2.xpose.msra.mxu0 0.0
        %871 = vmatprep.subr.mxu0 0.0
        %872 = vmatpush2.xpose.msra.mxu0 0.0
        %873 = vmatprep.subr.mxu0 0.0
        %874 = vmatpush2.xpose.msra.mxu0 0.0
        %875 = vmatprep.subr.mxu0 0.0
        %876 = vmatpush2.xpose.msra.mxu0 0.0
        %877 = vmatprep.subr.mxu0 0.0
        %878 = vmatpush2.xpose.msra.mxu0 0.0
        %879 = vmatprep.subr.mxu0 0.0
        %880 = vmatpush2.xpose.msra.mxu0 0.0
        %881 = vmatprep.subr.mxu0 0.0
        %882 = vmatpush2.xpose.msra.mxu0 0.0
        %883 = vmatprep.subr.mxu0 0.0
        %884 = vmatpush2.xpose.msra.mxu0 0.0
        %885 = vmatprep.subr.mxu0 0.0
        %886 = vmatpush2.xpose.msra.mxu0 0.0
        %887 = vmatprep.subr.mxu0 0.0
        %888 = vmatpush2.xpose.msra.mxu0 0.0
        %889 = vmatprep.subr.mxu0 0.0
        %890 = vmatpush2.xpose.msra.mxu0 0.0
        %891 = vmatprep.mubr.f32.mxu0 0.0
        %892 = vmatmul.mubr.f32.gmra.mxu0 %v823
        %v893 = vpop.f32.mrf.mxu0
        %v894 = vadd.f32 0.0, %v893
        %v895 = vpop.f32.mrf.mxu0
        %896 = vdwg.mxu0
        %v897 = vmul.f32 %v894, 0.35355338
        %v898 = vsel %vm655, %v897, -inf
        %899 = vmax.xlane.f32.xlu0 %v898
        %v900 = vpop.xlane.xlu0 %899
        %v901 = vsub.f32 %v897, %v900
        %v902 = vmul.f32 %v901, 1.442695
        %v903 = vpow.pop %v902
        %v904 = vsel %vm655, %v903, 0.0
        %905 = vadd.xlane.f32.xlu0 %v904
        %v906 = vpop.xlane.xlu0 %905
        %v907 = vrcp.pop %v906
        %v908 = vmul.f32 %v903, %v907
        %910 = vrot.lane.b32.xlu0 %v652, 120
        %v911 = vpop.permute.xlu0 %910
        %v914 = vsel %vm655, %v908, 0
        %916 = vmatprep.subr.mxu0 0.0
        %917 = vmatpush1.msra.mxu0 0.0
        %918 = vmatprep.subr.mxu0 0.0
        %919 = vmatpush1.msra.mxu0 0.0
        %920 = vmatprep.subr.mxu0 0.0
        %921 = vmatpush1.msra.mxu0 0.0
        %922 = vmatprep.subr.mxu0 0.0
        %923 = vmatpush1.msra.mxu0 0.0
        %924 = vmatprep.subr.mxu0 0.0
        %925 = vmatpush1.msra.mxu0 0.0
        %926 = vmatprep.subr.mxu0 0.0
        %927 = vmatpush1.msra.mxu0 0.0
        %928 = vmatprep.subr.mxu0 0.0
        %929 = vmatpush1.msra.mxu0 0.0
        %930 = vmatprep.subr.mxu0 0.0
        %931 = vmatpush1.msra.mxu0 0.0
        %932 = vmatprep.subr.mxu0 0.0
        %933 = vmatpush1.msra.mxu0 0.0
        %934 = vmatprep.subr.mxu0 0.0
        %935 = vmatpush1.msra.mxu0 0.0
        %936 = vmatprep.subr.mxu0 0.0
        %937 = vmatpush1.msra.mxu0 0.0
        %938 = vmatprep.subr.mxu0 0.0
        %939 = vmatpush1.msra.mxu0 0.0
        %940 = vmatprep.subr.mxu0 0.0
        %941 = vmatpush1.msra.mxu0 0.0
        %942 = vmatprep.subr.mxu0 0.0
        %943 = vmatpush1.msra.mxu0 0.0
        %944 = vmatprep.subr.mxu0 0.0
        %945 = vmatpush1.msra.mxu0 0.0
        %946 = vmatprep.subr.mxu0 0.0
        %947 = vmatpush1.msra.mxu0 %v911
        %948 = vmatprep.subr.mxu0 0.0
        %949 = vmatpush2.msra.mxu0 0.0
        %950 = vmatprep.subr.mxu0 0.0
        %951 = vmatpush2.msra.mxu0 0.0
        %952 = vmatprep.subr.mxu0 0.0
        %953 = vmatpush2.msra.mxu0 0.0
        %954 = vmatprep.subr.mxu0 0.0
        %955 = vmatpush2.msra.mxu0 0.0
        %956 = vmatprep.subr.mxu0 0.0
        %957 = vmatpush2.msra.mxu0 0.0
        %958 = vmatprep.subr.mxu0 0.0
        %959 = vmatpush2.msra.mxu0 0.0
        %960 = vmatprep.subr.mxu0 0.0
        %961 = vmatpush2.msra.mxu0 0.0
        %962 = vmatprep.subr.mxu0 0.0
        %963 = vmatpush2.msra.mxu0 0.0
        %964 = vmatprep.subr.mxu0 0.0
        %965 = vmatpush2.msra.mxu0 0.0
        %966 = vmatprep.subr.mxu0 0.0
        %967 = vmatpush2.msra.mxu0 0.0
        %968 = vmatprep.subr.mxu0 0.0
        %969 = vmatpush2.msra.mxu0 0.0
        %970 = vmatprep.subr.mxu0 0.0
        %971 = vmatpush2.msra.mxu0 0.0
        %972 = vmatprep.subr.mxu0 0.0
        %973 = vmatpush2.msra.mxu0 0.0
        %974 = vmatprep.subr.mxu0 0.0
        %975 = vmatpush2.msra.mxu0 0.0
        %976 = vmatprep.subr.mxu0 0.0
        %977 = vmatpush2.msra.mxu0 0.0
        %978 = vmatprep.subr.mxu0 0.0
        %979 = vmatpush2.msra.mxu0 0.0
        %980 = vmatprep.mubr.f32.mxu0 0.0
        %981 = vmatmul.mubr.f32.gmra.mxu0 %v914
        %v982 = vpop.f32.mrf.mxu0
        %v983 = vadd.f32 0.0, %v982
        %v984 = vpop.f32.mrf.mxu0
        %985 = vdwg.mxu0
        %s986 = scalar_lea.vmem %s412, 8 [#allocation13]
        %987 = vst.msk [vmem:[%s986] sm:$0xff] %vm655, %v908
        %s988 = scalar_lea.vmem %s419, 8 [#allocation14]
        %989 = vst.msk [vmem:[%s988] sm:$0xff] %vm655, %v983
        %990 = vrot.lane.b32.xlu0 %v498, 112
        %v991 = vpop.permute.xlu0 %990
        %992 = vrot.lane.b32.xlu0 %v575, 112
        %v993 = vpop.permute.xlu0 %992
        %v994 = vsel %vm655, %v991, 0
        %v996 = vsel %vm655, %v993, 0
        %998 = vmatprep.subr.mxu0 0.0
        %999 = vmatpush1.xpose.msra.mxu0 0.0
        %1000 = vmatprep.subr.mxu0 0.0
        %1001 = vmatpush1.xpose.msra.mxu0 0.0
        %1002 = vmatprep.subr.mxu0 0.0
        %1003 = vmatpush1.xpose.msra.mxu0 0.0
        %1004 = vmatprep.subr.mxu0 0.0
        %1005 = vmatpush1.xpose.msra.mxu0 0.0
        %1006 = vmatprep.subr.mxu0 0.0
        %1007 = vmatpush1.xpose.msra.mxu0 0.0
        %1008 = vmatprep.subr.mxu0 0.0
        %1009 = vmatpush1.xpose.msra.mxu0 0.0
        %1010 = vmatprep.subr.mxu0 0.0
        %1011 = vmatpush1.xpose.msra.mxu0 0.0
        %1012 = vmatprep.subr.mxu0 0.0
        %1013 = vmatpush1.xpose.msra.mxu0 0.0
        %1014 = vmatprep.subr.mxu0 0.0
        %1015 = vmatpush1.xpose.msra.mxu0 0.0
        %1016 = vmatprep.subr.mxu0 0.0
        %1017 = vmatpush1.xpose.msra.mxu0 0.0
        %1018 = vmatprep.subr.mxu0 0.0
        %1019 = vmatpush1.xpose.msra.mxu0 0.0
        %1020 = vmatprep.subr.mxu0 0.0
        %1021 = vmatpush1.xpose.msra.mxu0 0.0
        %1022 = vmatprep.subr.mxu0 0.0
        %1023 = vmatpush1.xpose.msra.mxu0 0.0
        %1024 = vmatprep.subr.mxu0 0.0
        %1025 = vmatpush1.xpose.msra.mxu0 0.0
        %1026 = vmatprep.subr.mxu0 0.0
        %1027 = vmatpush1.xpose.msra.mxu0 0.0
        %1028 = vmatprep.subr.mxu0 0.0
        %1029 = vmatpush1.xpose.msra.mxu0 %v996
        %1030 = vmatprep.subr.mxu0 0.0
        %1031 = vmatpush2.xpose.msra.mxu0 0.0
        %1032 = vmatprep.subr.mxu0 0.0
        %1033 = vmatpush2.xpose.msra.mxu0 0.0
        %1034 = vmatprep.subr.mxu0 0.0
        %1035 = vmatpush2.xpose.msra.mxu0 0.0
        %1036 = vmatprep.subr.mxu0 0.0
        %1037 = vmatpush2.xpose.msra.mxu0 0.0
        %1038 = vmatprep.subr.mxu0 0.0
        %1039 = vmatpush2.xpose.msra.mxu0 0.0
        %1040 = vmatprep.subr.mxu0 0.0
        %1041 = vmatpush2.xpose.msra.mxu0 0.0
        %1042 = vmatprep.subr.mxu0 0.0
        %1043 = vmatpush2.xpose.msra.mxu0 0.0
        %1044 = vmatprep.subr.mxu0 0.0
        %1045 = vmatpush2.xpose.msra.mxu0 0.0
        %1046 = vmatprep.subr.mxu0 0.0
        %1047 = vmatpush2.xpose.msra.mxu0 0.0
        %1048 = vmatprep.subr.mxu0 0.0
        %1049 = vmatpush2.xpose.msra.mxu0 0.0
        %1050 = vmatprep.subr.mxu0 0.0
        %1051 = vmatpush2.xpose.msra.mxu0 0.0
        %1052 = vmatprep.subr.mxu0 0.0
        %1053 = vmatpush2.xpose.msra.mxu0 0.0
        %1054 = vmatprep.subr.mxu0 0.0
        %1055 = vmatpush2.xpose.msra.mxu0 0.0
        %1056 = vmatprep.subr.mxu0 0.0
        %1057 = vmatpush2.xpose.msra.mxu0 0.0
        %1058 = vmatprep.subr.mxu0 0.0
        %1059 = vmatpush2.xpose.msra.mxu0 0.0
        %1060 = vmatprep.subr.mxu0 0.0
        %1061 = vmatpush2.xpose.msra.mxu0 0.0
        %1062 = vmatprep.mubr.f32.mxu0 0.0
        %1063 = vmatmul.mubr.f32.gmra.mxu0 %v994
        %v1064 = vpop.f32.mrf.mxu0
        %v1065 = vadd.f32 0.0, %v1064
        %v1066 = vpop.f32.mrf.mxu0
        %1067 = vdwg.mxu0
        %v1068 = vmul.f32 %v1065, 0.35355338
        %v1069 = vsel %vm655, %v1068, -inf
        %1070 = vmax.xlane.f32.xlu0 %v1069
        %v1071 = vpop.xlane.xlu0 %1070
        %v1072 = vsub.f32 %v1068, %v1071
        %v1073 = vmul.f32 %v1072, 1.442695
        %v1074 = vpow.pop %v1073
        %v1075 = vsel %vm655, %v1074, 0.0
        %1076 = vadd.xlane.f32.xlu0 %v1075
        %v1077 = vpop.xlane.xlu0 %1076
        %v1078 = vrcp.pop %v1077
        %v1079 = vmul.f32 %v1074, %v1078
        %1080 = vrot.lane.b32.xlu0 %v652, 112
        %v1081 = vpop.permute.xlu0 %1080
        %v1084 = vsel %vm655, %v1079, 0
        %1086 = vmatprep.subr.mxu0 0.0
        %1087 = vmatpush1.msra.mxu0 0.0
        %1088 = vmatprep.subr.mxu0 0.0
        %1089 = vmatpush1.msra.mxu0 0.0
        %1090 = vmatprep.subr.mxu0 0.0
        %1091 = vmatpush1.msra.mxu0 0.0
        %1092 = vmatprep.subr.mxu0 0.0
        %1093 = vmatpush1.msra.mxu0 0.0
        %1094 = vmatprep.subr.mxu0 0.0
        %1095 = vmatpush1.msra.mxu0 0.0
        %1096 = vmatprep.subr.mxu0 0.0
        %1097 = vmatpush1.msra.mxu0 0.0
        %1098 = vmatprep.subr.mxu0 0.0
        %1099 = vmatpush1.msra.mxu0 0.0
        %1100 = vmatprep.subr.mxu0 0.0
        %1101 = vmatpush1.msra.mxu0 0.0
        %1102 = vmatprep.subr.mxu0 0.0
        %1103 = vmatpush1.msra.mxu0 0.0
        %1104 = vmatprep.subr.mxu0 0.0
        %1105 = vmatpush1.msra.mxu0 0.0
        %1106 = vmatprep.subr.mxu0 0.0
        %1107 = vmatpush1.msra.mxu0 0.0
        %1108 = vmatprep.subr.mxu0 0.0
        %1109 = vmatpush1.msra.mxu0 0.0
        %1110 = vmatprep.subr.mxu0 0.0
        %1111 = vmatpush1.msra.mxu0 0.0
        %1112 = vmatprep.subr.mxu0 0.0
        %1113 = vmatpush1.msra.mxu0 0.0
        %1114 = vmatprep.subr.mxu0 0.0
        %1115 = vmatpush1.msra.mxu0 0.0
        %1116 = vmatprep.subr.mxu0 0.0
        %1117 = vmatpush1.msra.mxu0 %v1081
        %1118 = vmatprep.subr.mxu0 0.0
        %1119 = vmatpush2.msra.mxu0 0.0
        %1120 = vmatprep.subr.mxu0 0.0
        %1121 = vmatpush2.msra.mxu0 0.0
        %1122 = vmatprep.subr.mxu0 0.0
        %1123 = vmatpush2.msra.mxu0 0.0
        %1124 = vmatprep.subr.mxu0 0.0
        %1125 = vmatpush2.msra.mxu0 0.0
        %1126 = vmatprep.subr.mxu0 0.0
        %1127 = vmatpush2.msra.mxu0 0.0
        %1128 = vmatprep.subr.mxu0 0.0
        %1129 = vmatpush2.msra.mxu0 0.0
        %1130 = vmatprep.subr.mxu0 0.0
        %1131 = vmatpush2.msra.mxu0 0.0
        %1132 = vmatprep.subr.mxu0 0.0
        %1133 = vmatpush2.msra.mxu0 0.0
        %1134 = vmatprep.subr.mxu0 0.0
        %1135 = vmatpush2.msra.mxu0 0.0
        %1136 = vmatprep.subr.mxu0 0.0
        %1137 = vmatpush2.msra.mxu0 0.0
        %1138 = vmatprep.subr.mxu0 0.0
        %1139 = vmatpush2.msra.mxu0 0.0
        %1140 = vmatprep.subr.mxu0 0.0
        %1141 = vmatpush2.msra.mxu0 0.0
        %1142 = vmatprep.subr.mxu0 0.0
        %1143 = vmatpush2.msra.mxu0 0.0
        %1144 = vmatprep.subr.mxu0 0.0
        %1145 = vmatpush2.msra.mxu0 0.0
        %1146 = vmatprep.subr.mxu0 0.0
        %1147 = vmatpush2.msra.mxu0 0.0
        %1148 = vmatprep.subr.mxu0 0.0
        %1149 = vmatpush2.msra.mxu0 0.0
        %1150 = vmatprep.mubr.f32.mxu0 0.0
        %1151 = vmatmul.mubr.f32.gmra.mxu0 %v1084
        %v1152 = vpop.f32.mrf.mxu0
        %v1153 = vadd.f32 0.0, %v1152
        %v1154 = vpop.f32.mrf.mxu0
        %1155 = vdwg.mxu0
        %s1156 = scalar_lea.vmem %s412, 16 [#allocation13]
        %1157 = vst.msk [vmem:[%s1156] sm:$0xff] %vm655, %v1079
        %s1158 = scalar_lea.vmem %s419, 16 [#allocation14]
        %1159 = vst.msk [vmem:[%s1158] sm:$0xff] %vm655, %v1153
        %1160 = vrot.lane.b32.xlu0 %v498, 104
        %v1161 = vpop.permute.xlu0 %1160
        %1162 = vrot.lane.b32.xlu0 %v575, 104
        %v1163 = vpop.permute.xlu0 %1162
        %v1164 = vsel %vm655, %v1161, 0
        %v1166 = vsel %vm655, %v1163, 0
        %1168 = vmatprep.subr.mxu0 0.0
        %1169 = vmatpush1.xpose.msra.mxu0 0.0
        %1170 = vmatprep.subr.mxu0 0.0
        %1171 = vmatpush1.xpose.msra.mxu0 0.0
        %1172 = vmatprep.subr.mxu0 0.0
        %1173 = vmatpush1.xpose.msra.mxu0 0.0
        %1174 = vmatprep.subr.mxu0 0.0
        %1175 = vmatpush1.xpose.msra.mxu0 0.0
        %1176 = vmatprep.subr.mxu0 0.0
        %1177 = vmatpush1.xpose.msra.mxu0 0.0
        %1178 = vmatprep.subr.mxu0 0.0
        %1179 = vmatpush1.xpose.msra.mxu0 0.0
        %1180 = vmatprep.subr.mxu0 0.0
        %1181 = vmatpush1.xpose.msra.mxu0 0.0
        %1182 = vmatprep.subr.mxu0 0.0
        %1183 = vmatpush1.xpose.msra.mxu0 0.0
        %1184 = vmatprep.subr.mxu0 0.0
        %1185 = vmatpush1.xpose.msra.mxu0 0.0
        %1186 = vmatprep.subr.mxu0 0.0
        %1187 = vmatpush1.xpose.msra.mxu0 0.0
        %1188 = vmatprep.subr.mxu0 0.0
        %1189 = vmatpush1.xpose.msra.mxu0 0.0
        %1190 = vmatprep.subr.mxu0 0.0
        %1191 = vmatpush1.xpose.msra.mxu0 0.0
        %1192 = vmatprep.subr.mxu0 0.0
        %1193 = vmatpush1.xpose.msra.mxu0 0.0
        %1194 = vmatprep.subr.mxu0 0.0
        %1195 = vmatpush1.xpose.msra.mxu0 0.0
        %1196 = vmatprep.subr.mxu0 0.0
        %1197 = vmatpush1.xpose.msra.mxu0 0.0
        %1198 = vmatprep.subr.mxu0 0.0
        %1199 = vmatpush1.xpose.msra.mxu0 %v1166
        %1200 = vmatprep.subr.mxu0 0.0
        %1201 = vmatpush2.xpose.msra.mxu0 0.0
        %1202 = vmatprep.subr.mxu0 0.0
        %1203 = vmatpush2.xpose.msra.mxu0 0.0
        %1204 = vmatprep.subr.mxu0 0.0
        %1205 = vmatpush2.xpose.msra.mxu0 0.0
        %1206 = vmatprep.subr.mxu0 0.0
        %1207 = vmatpush2.xpose.msra.mxu0 0.0
        %1208 = vmatprep.subr.mxu0 0.0
        %1209 = vmatpush2.xpose.msra.mxu0 0.0
        %1210 = vmatprep.subr.mxu0 0.0
        %1211 = vmatpush2.xpose.msra.mxu0 0.0
        %1212 = vmatprep.subr.mxu0 0.0
        %1213 = vmatpush2.xpose.msra.mxu0 0.0
        %1214 = vmatprep.subr.mxu0 0.0
        %1215 = vmatpush2.xpose.msra.mxu0 0.0
        %1216 = vmatprep.subr.mxu0 0.0
        %1217 = vmatpush2.xpose.msra.mxu0 0.0
        %1218 = vmatprep.subr.mxu0 0.0
        %1219 = vmatpush2.xpose.msra.mxu0 0.0
        %1220 = vmatprep.subr.mxu0 0.0
        %1221 = vmatpush2.xpose.msra.mxu0 0.0
        %1222 = vmatprep.subr.mxu0 0.0
        %1223 = vmatpush2.xpose.msra.mxu0 0.0
        %1224 = vmatprep.subr.mxu0 0.0
        %1225 = vmatpush2.xpose.msra.mxu0 0.0
        %1226 = vmatprep.subr.mxu0 0.0
        %1227 = vmatpush2.xpose.msra.mxu0 0.0
        %1228 = vmatprep.subr.mxu0 0.0
        %1229 = vmatpush2.xpose.msra.mxu0 0.0
        %1230 = vmatprep.subr.mxu0 0.0
        %1231 = vmatpush2.xpose.msra.mxu0 0.0
        %1232 = vmatprep.mubr.f32.mxu0 0.0
        %1233 = vmatmul.mubr.f32.gmra.mxu0 %v1164
        %v1234 = vpop.f32.mrf.mxu0
        %v1235 = vadd.f32 0.0, %v1234
        %v1236 = vpop.f32.mrf.mxu0
        %1237 = vdwg.mxu0
        %v1238 = vmul.f32 %v1235, 0.35355338
        %v1239 = vsel %vm655, %v1238, -inf
        %1240 = vmax.xlane.f32.xlu0 %v1239
        %v1241 = vpop.xlane.xlu0 %1240
        %v1242 = vsub.f32 %v1238, %v1241
        %v1243 = vmul.f32 %v1242, 1.442695
        %v1244 = vpow.pop %v1243
        %v1245 = vsel %vm655, %v1244, 0.0
        %1246 = vadd.xlane.f32.xlu0 %v1245
        %v1247 = vpop.xlane.xlu0 %1246
        %v1248 = vrcp.pop %v1247
        %v1249 = vmul.f32 %v1244, %v1248
        %1250 = vrot.lane.b32.xlu0 %v652, 104
        %v1251 = vpop.permute.xlu0 %1250
        %v1254 = vsel %vm655, %v1249, 0
        %1256 = vmatprep.subr.mxu0 0.0
        %1257 = vmatpush1.msra.mxu0 0.0
        %1258 = vmatprep.subr.mxu0 0.0
        %1259 = vmatpush1.msra.mxu0 0.0
        %1260 = vmatprep.subr.mxu0 0.0
        %1261 = vmatpush1.msra.mxu0 0.0
        %1262 = vmatprep.subr.mxu0 0.0
        %1263 = vmatpush1.msra.mxu0 0.0
        %1264 = vmatprep.subr.mxu0 0.0
        %1265 = vmatpush1.msra.mxu0 0.0
        %1266 = vmatprep.subr.mxu0 0.0
        %1267 = vmatpush1.msra.mxu0 0.0
        %1268 = vmatprep.subr.mxu0 0.0
        %1269 = vmatpush1.msra.mxu0 0.0
        %1270 = vmatprep.subr.mxu0 0.0
        %1271 = vmatpush1.msra.mxu0 0.0
        %1272 = vmatprep.subr.mxu0 0.0
        %1273 = vmatpush1.msra.mxu0 0.0
        %1274 = vmatprep.subr.mxu0 0.0
        %1275 = vmatpush1.msra.mxu0 0.0
        %1276 = vmatprep.subr.mxu0 0.0
        %1277 = vmatpush1.msra.mxu0 0.0
        %1278 = vmatprep.subr.mxu0 0.0
        %1279 = vmatpush1.msra.mxu0 0.0
        %1280 = vmatprep.subr.mxu0 0.0
        %1281 = vmatpush1.msra.mxu0 0.0
        %1282 = vmatprep.subr.mxu0 0.0
        %1283 = vmatpush1.msra.mxu0 0.0
        %1284 = vmatprep.subr.mxu0 0.0
        %1285 = vmatpush1.msra.mxu0 0.0
        %1286 = vmatprep.subr.mxu0 0.0
        %1287 = vmatpush1.msra.mxu0 %v1251
        %1288 = vmatprep.subr.mxu0 0.0
        %1289 = vmatpush2.msra.mxu0 0.0
        %1290 = vmatprep.subr.mxu0 0.0
        %1291 = vmatpush2.msra.mxu0 0.0
        %1292 = vmatprep.subr.mxu0 0.0
        %1293 = vmatpush2.msra.mxu0 0.0
        %1294 = vmatprep.subr.mxu0 0.0
        %1295 = vmatpush2.msra.mxu0 0.0
        %1296 = vmatprep.subr.mxu0 0.0
        %1297 = vmatpush2.msra.mxu0 0.0
        %1298 = vmatprep.subr.mxu0 0.0
        %1299 = vmatpush2.msra.mxu0 0.0
        %1300 = vmatprep.subr.mxu0 0.0
        %1301 = vmatpush2.msra.mxu0 0.0
        %1302 = vmatprep.subr.mxu0 0.0
        %1303 = vmatpush2.msra.mxu0 0.0
        %1304 = vmatprep.subr.mxu0 0.0
        %1305 = vmatpush2.msra.mxu0 0.0
        %1306 = vmatprep.subr.mxu0 0.0
        %1307 = vmatpush2.msra.mxu0 0.0
        %1308 = vmatprep.subr.mxu0 0.0
        %1309 = vmatpush2.msra.mxu0 0.0
        %1310 = vmatprep.subr.mxu0 0.0
        %1311 = vmatpush2.msra.mxu0 0.0
        %1312 = vmatprep.subr.mxu0 0.0
        %1313 = vmatpush2.msra.mxu0 0.0
        %1314 = vmatprep.subr.mxu0 0.0
        %1315 = vmatpush2.msra.mxu0 0.0
        %1316 = vmatprep.subr.mxu0 0.0
        %1317 = vmatpush2.msra.mxu0 0.0
        %1318 = vmatprep.subr.mxu0 0.0
        %1319 = vmatpush2.msra.mxu0 0.0
        %1320 = vmatprep.mubr.f32.mxu0 0.0
        %1321 = vmatmul.mubr.f32.gmra.mxu0 %v1254
        %v1322 = vpop.f32.mrf.mxu0
        %v1323 = vadd.f32 0.0, %v1322
        %v1324 = vpop.f32.mrf.mxu0
        %1325 = vdwg.mxu0
        %s1326 = scalar_lea.vmem %s412, 24 [#allocation13]
        %1327 = vst.msk [vmem:[%s1326] sm:$0xff] %vm655, %v1249
        %s1328 = scalar_lea.vmem %s419, 24 [#allocation14]
        %1329 = vst.msk [vmem:[%s1328] sm:$0xff] %vm655, %v1323
        %s1330 = sand.u32 %s182, 1
        %s1331 = scalar_lea.sflag [#allocation4], %s1330
        %s1332 = sand.u32 %s182, 1
        %s1333 = smul.addr %s1332, 32
        %s1334 = scalar_lea.vmem [#allocation13], %s1333
        %s1335 = sand.u32 %s208, 1
        %s1336 = scalar_lea.sflag [#allocation15], %s1335
        %s1337 = sand.u32 %s208, 1
        %s1338 = smul.addr %s1337, 32
        %s1339 = scalar_lea.vmem [#allocation14], %s1338
        // Predicated region
        $region69: #{tpu_custom_call.1} parent=43 // pred_check
          %p1340 = pneg %p192
        $region70: #{tpu_custom_call.1} parent=43 // pred_check_branch
          %1342 = sbr.rel (%p1340) target = $region72
        $region71: #{tpu_custom_call.1} parent=43 // pred_region
          %s1344 = ssub.s32 512, 512
          %1345 = vsyncadd %s1331, %s1344
          %s1346 = smul.addr %s33, 4
          %s1347 = smul.addr %s1346, 128
          %s1348 = scalar_lea.hbm %s6, %s1347
          %s1349 = sshll.u32 %s1334, 4
          %s1350 = int_to_ptr.vmem [resolvable:$true] %s1349
          %1355 = dma.vmem_to_hbm [thread:$0]  %s1350, 512, %s1348, %s1331, 128, 128, 8
        $region72: #{tpu_custom_call.1} parent=43 // pred_fallthru
          _
        // Predicated region
        $region73: #{tpu_custom_call.1} parent=43 // pred_check
          %p1356 = pneg %p218
        $region74: #{tpu_custom_call.1} parent=43 // pred_check_branch
          %1358 = sbr.rel (%p1356) target = $region76
        $region75: #{tpu_custom_call.1} parent=43 // pred_region
          %s1360 = ssub.s32 512, 512
          %1361 = vsyncadd %s1336, %s1360
          %s1362 = smul.addr %s33, 4
          %s1363 = smul.addr %s1362, 128
          %s1364 = scalar_lea.hbm %s7, %s1363
          %s1365 = sshll.u32 %s1339, 4
          %s1366 = int_to_ptr.vmem [resolvable:$true] %s1365
          %1371 = dma.vmem_to_hbm [thread:$0]  %s1366, 512, %s1364, %s1336, 128, 128, 8
        $region76: #{tpu_custom_call.1} parent=43 // pred_fallthru
          _
      $region44: #{tpu_custom_call.1} parent=5 // pred_fallthru
        _
      %p1372 = scmp.le.s32.totalorder 2, %s28
      // Predicated region
      $region77: #{tpu_custom_call.1} parent=5 // pred_check
        %p1373 = pneg %p1372
      $region78: #{tpu_custom_call.1} parent=5 // pred_check_branch
        %1375 = sbr.rel (%p1373) target = $region80
      $region79: #{tpu_custom_call.1} parent=5 // pred_region
        %s1376 = ssub.s32 %s28, 2
        // Predicated region
        $region81: #{tpu_custom_call.1} parent=79 // pred_check
          %p1377 = pneg %p198
        $region82: #{tpu_custom_call.1} parent=79 // pred_check_branch
          %1379 = sbr.rel (%p1377) target = $region84
        $region83: #{tpu_custom_call.1} parent=79 // pred_region
          %s1380 = sand.u32 %s183, 1
          %s1381 = scalar_lea.sflag [#allocation4], %s1380
          %s1382 = sand.u32 %s183, 1
          %s1383 = smul.addr %s1382, 32
          %s1384 = scalar_lea.vmem [#allocation13], %s1383
          %1385 = dma.done %s1381, 512
        $region84: #{tpu_custom_call.1} parent=79 // pred_fallthru
          _
        // Predicated region
        $region85: #{tpu_custom_call.1} parent=79 // pred_check
          %p1386 = pneg %p224
        $region86: #{tpu_custom_call.1} parent=79 // pred_check_branch
          %1388 = sbr.rel (%p1386) target = $region88
        $region87: #{tpu_custom_call.1} parent=79 // pred_region
          %s1389 = sand.u32 %s209, 1
          %s1390 = scalar_lea.sflag [#allocation15], %s1389
          %s1391 = sand.u32 %s209, 1
          %s1392 = smul.addr %s1391, 32
          %s1393 = scalar_lea.vmem [#allocation14], %s1392
          %1394 = dma.done %s1390, 512
        $region88: #{tpu_custom_call.1} parent=79 // pred_fallthru
          _
      $region80: #{tpu_custom_call.1} parent=5 // pred_fallthru
        _
    $region6: #{tpu_custom_call.1} parent=1 // loop_footer
      %s32 = sadd.s32 1, %s28
    $region7: #{tpu_custom_call.1} parent=1 // loop_footer_branch
      %27 = sbr.rel target = $region3
    $region8: #{tpu_custom_call.1} parent=1 // loop_exit
      _
    %1395 = vsyncpa [#allocation3], 1
    %s1396 = scalar_lea.sflag [#allocation3], 1
    %1397 = vsyncpa %s1396, 1
    %1398 = vsyncpa [#allocation6], 1
    %s1399 = scalar_lea.sflag [#allocation6], 1
    %1400 = vsyncpa %s1399, 1
    %1401 = vsyncpa [#allocation9], 1
    %1402 = vsyncpa [#allocation12], 1
    %1403 = vsyncpa [#allocation4], 1
    %s1404 = scalar_lea.sflag [#allocation4], 1
    %1405 = vsyncpa %s1404, 1
    %1406 = vsyncpa [#allocation15], 1
    %s1407 = scalar_lea.sflag [#allocation15], 1
    %1408 = vsyncpa %s1407, 1

</llo_original>
